<compile_context>
chip_gen: v6e
topology: v6e:2x2x1
jax: 0.10.0
libtpu: 0.0.40
codegen_flags: <defaults>
</compile_context>

<pallas_src>
import jax
import jax.numpy as jnp
from jax import lax
from jax.experimental import pallas as pl
from jax.experimental.pallas import tpu as pltpu


# ----------------------------------------------------------------------------
# Fused CBAM kernel: one batch tile per grid step, everything lane-dense.
# ----------------------------------------------------------------------------
def cbam_fused_kernel(x_ref, w1t_ref, b1_ref, w2t_ref, b2_ref, m_ref, bias_ref,
                      out_ref):
    x = x_ref[...]                                        # (Bt, C, HW) f32
    bt = x.shape[0]                                       # static

    # ---- channel attention: global avg/max pool -> 1x1-conv MLP -> sigmoid ----
    avg_c = jnp.mean(x, axis=2)                           # (Bt, C)
    max_c = jnp.max(x, axis=2)                            # (Bt, C)
    # One pass through the shared excitation MLP for both pooled statistics:
    # stack rows [avg ; max] and run two small MXU dots.
    pooled = jnp.concatenate([avg_c, max_c], axis=0)      # (2*Bt, C)
    h = jnp.dot(pooled, w1t_ref[...],
                preferred_element_type=jnp.float32) + b1_ref[...]     # (2*Bt, Cr)
    h = jnp.maximum(h, 0.0)                               # ReLU
    e = jnp.dot(h, w2t_ref[...],
                preferred_element_type=jnp.float32) + b2_ref[...]     # (2*Bt, C)
    att_c = jax.nn.sigmoid(e[:bt] + e[bt:])               # (Bt, C)
    ca = x * att_c[:, :, None]                            # (Bt, C, HW)

    # ---- spatial attention: channel mean/max -> (BN1 . conv7x7 . BN2) -> sigmoid ----
    # BN1/conv/BN2 are folded on the host into one (2*HW, HW) matrix + a (1, HW)
    # bias row, so the whole stencil is ONE MXU matmul on the stacked stat rows.
    avg_s = jnp.mean(ca, axis=1)                          # (Bt, HW)
    max_s = jnp.max(ca, axis=1)                           # (Bt, HW)
    stats = jnp.concatenate([avg_s, max_s], axis=1)       # (Bt, 2*HW)
    logits = jnp.dot(stats, m_ref[...],
                     preferred_element_type=jnp.float32) + bias_ref[...]   # (Bt, HW)
    att_s = jax.nn.sigmoid(logits)

    out_ref[...] = ca * att_s[:, None, :]                 # broadcast over channels


def cbam_pallas_call(x2, w1t, b1r, w2t, b2r, m_all, bias, *,
                     bt=None, single_buffer_weights=True):
    B, C, HW = x2.shape
    Cr = w1t.shape[1]
    bt = B if bt is None else bt
    assert B % bt == 0, "batch must be divisible by the batch tile"

    def weight_spec(shape):
        # Grid-invariant inputs (index_map constant across grid steps): request
        # single buffering so they are not double-resident in VMEM.
        idx = lambda b: (0,) * len(shape)
        if single_buffer_weights:
            return pl.BlockSpec(shape, idx, pipeline_mode=pl.Buffered(1))
        return pl.BlockSpec(shape, idx)

    grid_spec = pltpu.PrefetchScalarGridSpec(
        num_scalar_prefetch=0,
        grid=(B // bt,),
        in_specs=[
            pl.BlockSpec((bt, C, HW), lambda b: (b, 0, 0)),   # x, per-batch-tile
            weight_spec((C, Cr)),                             # w1^T
            weight_spec((1, Cr)),                             # b1 row
            weight_spec((Cr, C)),                             # w2^T
            weight_spec((1, C)),                              # b2 row (lane-dense)
            weight_spec((2 * HW, HW)),                        # merged folded conv matrix
            weight_spec((1, HW)),                             # folded conv bias row
        ],
        out_specs=pl.BlockSpec((bt, C, HW), lambda b: (b, 0, 0)),
    )
    return pl.pallas_call(
        cbam_fused_kernel,
        out_shape=jax.ShapeDtypeStruct((B, C, HW), jnp.float32),
        grid_spec=grid_spec,
        compiler_params=pltpu.CompilerParams(
            # Batch tiles are independent -> v7x 2-TC split (neutral on v5e/v6e).
            dimension_semantics=("parallel",),
        ),
    )(x2, w1t, b1r, w2t, b2r, m_all, bias)


# ----------------------------------------------------------------------------
# Host-side parameter folding (eval-mode BN + 7x7 conv -> dense linear map).
# ----------------------------------------------------------------------------
def _fold_spatial_attention(p, H, W, eps=1e-5):
    """Fold BN1 -> conv7x7 -> BN2 into:  logits = [mean | max] @ M + bias."""
    HW = H * W
    s1 = p["bn1_gamma"] / jnp.sqrt(p["bn1_var"] + eps)      # (2,)
    t1 = p["bn1_beta"] - p["bn1_mean"] * s1                 # (2,)
    s2 = p["bn2_gamma"] / jnp.sqrt(p["bn2_var"] + eps)      # (1,)
    t2 = p["bn2_beta"] - p["bn2_mean"] * s2                 # (1,)

    dn = ("NCHW", "OIHW", "NCHW")
    hp = lax.Precision.HIGHEST
    eye = jnp.eye(HW, dtype=jnp.float32).reshape(HW, 1, H, W)
    zeros = jnp.zeros_like(eye)
    # Row i of m{c}: conv response (flattened, row-major) to a unit impulse at
    # flat pixel i on channel c, pre-scaled by the BN1 scale of that channel.
    basis0 = jnp.concatenate([s1[0] * eye, zeros], axis=1)   # (HW, 2, H, W)
    basis1 = jnp.concatenate([zeros, s1[1] * eye], axis=1)
    m0 = lax.conv_general_dilated(basis0, p["wconv"], (1, 1), "SAME",
                                  dimension_numbers=dn, precision=hp).reshape(HW, HW)
    m1 = lax.conv_general_dilated(basis1, p["wconv"], (1, 1), "SAME",
                                  dimension_numbers=dn, precision=hp).reshape(HW, HW)
    # BN1 shift term: conv of a constant-inside / zero-padded map.  This captures
    # the spatially varying border truncation of the "+t1" contribution exactly.
    const_map = jnp.broadcast_to(t1[None, :, None, None], (1, 2, H, W))
    bias_map = lax.conv_general_dilated(const_map, p["wconv"], (1, 1), "SAME",
                                        dimension_numbers=dn, precision=hp).reshape(1, HW)
    # Fold BN2 scale/shift and merge the two conv matrices into one (2*HW, HW).
    # TODO(synk): keep f32 here; bf16 weights would halve VMEM/DMA bytes but need
    #   re-validation against the 2e-3 tolerance before enabling.
    m_all = jnp.concatenate([m0 * s2[0], m1 * s2[0]], axis=0).astype(jnp.float32)
    bias = (bias_map * s2[0] + t2[0]).astype(jnp.float32)
    return m_all, bias


def make_params(key, channels, reduction_rate=16, kernel_size=7):
    cr = channels // reduction_rate
    ks = jax.random.split(key, 8)
    p = {
        "w1": 0.2 * jax.random.normal(ks[0], (cr, channels), jnp.float32),
        "b1": 0.1 * jax.random.normal(ks[1], (cr,), jnp.float32),
        "w2": 0.2 * jax.random.normal(ks[2], (channels, cr), jnp.float32),
        "b2": 0.1 * jax.random.normal(ks[3], (channels,), jnp.float32),
        "wconv": 0.2 * jax.random.normal(ks[4], (1, 2, kernel_size, kernel_size),
                                         jnp.float32),
        # BatchNorm parameters (eval mode: running stats).
        "bn1_gamma": 1.0 + 0.1 * jax.random.normal(ks[5], (2,), jnp.float32),
        "bn1_beta": 0.1 * jax.random.normal(ks[6], (2,), jnp.float32),
        "bn1_mean": jnp.array([0.05, -0.03], jnp.float32),
        "bn1_var": jnp.array([1.1, 0.9], jnp.float32),
        "bn2_gamma": jnp.array([1.05], jnp.float32),
        "bn2_beta": jnp.array([-0.02], jnp.float32),
        "bn2_mean": jnp.array([0.01], jnp.float32),
        "bn2_var": jnp.array([1.2], jnp.float32),
    }
    return p


def cbam_forward(x, p):
    B, C, H, W = x.shape
    cr = p["w1"].shape[0]
    HW = H * W

    # Channel-attention parameters, reshaped lane-dense for the in-kernel MXU dots.
    w1t = jnp.transpose(p["w1"]).astype(jnp.float32)        # (C, Cr)
    b1r = p["b1"].reshape(1, cr).astype(jnp.float32)        # (1, Cr)
    w2t = jnp.transpose(p["w2"]).astype(jnp.float32)        # (Cr, C)
    b2r = p["b2"].reshape(1, C).astype(jnp.float32)         # (1, C)

    # Spatial-attention stage folded into one dense matrix + bias row (host, once).
    m_all, bias = _fold_spatial_attention(p, H, W)

    x2 = x.reshape(B, C, HW).astype(jnp.float32)            # lane-dense layout

    try:
        out2 = cbam_pallas_call(x2, w1t, b1r, w2t, b2r, m_all, bias,
                                single_buffer_weights=True)
    except Exception:
        # pl.Buffered(1) single-buffering of grid-invariant weights is a pure
        # VMEM-residency hint; if this jax/Mosaic build rejects the pipeline_mode
        # kwarg, fall back to default double buffering (identical semantics).
        out2 = cbam_pallas_call(x2, w1t, b1r, w2t, b2r, m_all, bias,
                                single_buffer_weights=False)
    return out2.reshape(B, C, H, W)


# ----------------------------------------------------------------------------
# Pure-JAX reference (mirrors the PyTorch module, NCHW).
# ----------------------------------------------------------------------------
def cbam_reference(x, p):
    eps = 1e-5
    hp = lax.Precision.HIGHEST
    w1, b1, w2, b2 = p["w1"], p["b1"], p["w2"], p["b2"]

    avg = jnp.mean(x, axis=(2, 3), keepdims=True)
    mx = jnp.max(x, axis=(2, 3), keepdims=True)

    def excite(v):
        h = jnp.einsum("oc,bcij->boij", w1, v, precision=hp) + b1[None, :, None, None]
        h = jnp.maximum(h, 0.0)
        return jnp.einsum("oc,bcij->boij", w2, h, precision=hp) + b2[None, :, None, None]

    att_c = jax.nn.sigmoid(excite(avg) + excite(mx))
    ca = att_c * x

    avg_sp = jnp.mean(ca, axis=1, keepdims=True)
    max_sp = jnp.max(ca, axis=1, keepdims=True)
    feat = jnp.concatenate([avg_sp, max_sp], axis=1)
    s1 = p["bn1_gamma"] / jnp.sqrt(p["bn1_var"] + eps)
    t1 = p["bn1_beta"] - p["bn1_mean"] * s1
    feat = feat * s1[None, :, None, None] + t1[None, :, None, None]
    conv = lax.conv_general_dilated(feat, p["wconv"], (1, 1), "SAME",
                                    dimension_numbers=("NCHW", "OIHW", "NCHW"),
                                    precision=hp)
    s2 = p["bn2_gamma"] / jnp.sqrt(p["bn2_var"] + eps)
    t2 = p["bn2_beta"] - p["bn2_mean"] * s2
    conv = conv * s2[None, :, None, None] + t2[None, :, None, None]
    att_s = jax.nn.sigmoid(conv)
    return att_s * ca


if __name__ == "__main__":
    B, C, H, W = 2, 32, 16, 16          # channels must be >= reduction_rate
    reduction_rate, kernel_size = 16, 7

    key = jax.random.PRNGKey(0)
    kx, kp = jax.random.split(key)
    x = jax.random.normal(kx, (B, C, H, W), jnp.float32)
    params = make_params(kp, C, reduction_rate, kernel_size)

    out = cbam_forward(x, params)
    out = jax.block_until_ready(out)

    ref = cbam_reference(x, params)
    err = float(jnp.max(jnp.abs(out - ref)))
    assert out.shape == x.shape
    assert err < 2e-3, f"max abs err {err}"
    print("KERNEL_OK")
</pallas_src>

<mosaic_0001>
module attributes {stable_mosaic.version = 11 : i64} {
  func.func @cbam_fused_kernel(%arg0: i32, %arg1: memref<2x32x256xf32, #tpu.memory_space<vmem>>, %arg2: memref<32x2xf32, #tpu.memory_space<vmem>>, %arg3: memref<1x2xf32, #tpu.memory_space<vmem>>, %arg4: memref<2x32xf32, #tpu.memory_space<vmem>>, %arg5: memref<1x32xf32, #tpu.memory_space<vmem>>, %arg6: memref<512x256xf32, #tpu.memory_space<vmem>>, %arg7: memref<1x256xf32, #tpu.memory_space<vmem>>, %arg8: memref<2x32x256xf32, #tpu.memory_space<vmem>>) attributes {dimension_semantics = [#tpu.dimension_semantics<parallel>], iteration_bounds = array<i64: 1>, scalar_prefetch = 0 : i64, scratch_operands = 0 : i64, tpu.core_type = #tpu.core_type<tc>, window_params = [{transform_indices = @transform_0, window_bounds = array<i64: 2, 32, 256>}, {pipeline_mode = #tpu.pipeline_mode<synchronous>, transform_indices = @transform_1, window_bounds = array<i64: 32, 2>}, {pipeline_mode = #tpu.pipeline_mode<synchronous>, transform_indices = @transform_2, window_bounds = array<i64: 1, 2>}, {pipeline_mode = #tpu.pipeline_mode<synchronous>, transform_indices = @transform_3, window_bounds = array<i64: 2, 32>}, {pipeline_mode = #tpu.pipeline_mode<synchronous>, transform_indices = @transform_4, window_bounds = array<i64: 1, 32>}, {pipeline_mode = #tpu.pipeline_mode<synchronous>, transform_indices = @transform_5, window_bounds = array<i64: 512, 256>}, {pipeline_mode = #tpu.pipeline_mode<synchronous>, transform_indices = @transform_6, window_bounds = array<i64: 1, 256>}, {transform_indices = @transform_7, window_bounds = array<i64: 2, 32, 256>}]} {
    %c0 = arith.constant 0 : index
    %c0_0 = arith.constant 0 : index
    %c0_1 = arith.constant 0 : index
    %0 = vector.load %arg1[%c0, %c0_0, %c0_1] : memref<2x32x256xf32, #tpu.memory_space<vmem>>, vector<2x32x256xf32>
    %cst = arith.constant dense<0.000000e+00> : vector<2x32xf32>
    %1 = vector.multi_reduction <add>, %0, %cst [2] : vector<2x32x256xf32> to vector<2x32xf32>
    %cst_2 = arith.constant 2.560000e+02 : f32
    %2 = vector.broadcast %cst_2 : f32 to vector<2x32xf32>
    %3 = arith.divf %1, %2 : vector<2x32xf32>
    %cst_3 = arith.constant dense<0xFF800000> : vector<2x32xf32>
    %4 = vector.multi_reduction <maximumf>, %0, %cst_3 [2] : vector<2x32x256xf32> to vector<2x32xf32>
    %5 = tpu.concatenate %3, %4 in 0 : vector<2x32xf32>, vector<2x32xf32> -> vector<4x32xf32>
    %c0_4 = arith.constant 0 : index
    %c0_5 = arith.constant 0 : index
    %6 = vector.load %arg2[%c0_4, %c0_5] : memref<32x2xf32, #tpu.memory_space<vmem>>, vector<32x2xf32>
    %cst_6 = arith.constant dense<0.000000e+00> : vector<4x2xf32>
    %7 = tpu.matmul %5, %6, %cst_6 {dimension_numbers = #tpu.dot_dimension_numbers<[1], [0], [0], [1], [0, 0, 1, 1], [], []>} : vector<4x32xf32>, vector<32x2xf32>, vector<4x2xf32> -> vector<4x2xf32>
    %c0_7 = arith.constant 0 : index
    %c0_8 = arith.constant 0 : index
    %8 = vector.load %arg3[%c0_7, %c0_8] : memref<1x2xf32, #tpu.memory_space<vmem>>, vector<1x2xf32>
    %9 = vector.broadcast %8 : vector<1x2xf32> to vector<4x2xf32>
    %10 = arith.addf %7, %9 : vector<4x2xf32>
    %cst_9 = arith.constant 0.000000e+00 : f32
    %11 = vector.broadcast %cst_9 : f32 to vector<4x2xf32>
    %12 = arith.maximumf %10, %11 : vector<4x2xf32>
    %c0_10 = arith.constant 0 : index
    %c0_11 = arith.constant 0 : index
    %13 = vector.load %arg4[%c0_10, %c0_11] : memref<2x32xf32, #tpu.memory_space<vmem>>, vector<2x32xf32>
    %cst_12 = arith.constant dense<0.000000e+00> : vector<4x32xf32>
    %14 = tpu.matmul %12, %13, %cst_12 {dimension_numbers = #tpu.dot_dimension_numbers<[1], [0], [0], [1], [0, 0, 1, 1], [], []>} : vector<4x2xf32>, vector<2x32xf32>, vector<4x32xf32> -> vector<4x32xf32>
    %c0_13 = arith.constant 0 : index
    %c0_14 = arith.constant 0 : index
    %15 = vector.load %arg5[%c0_13, %c0_14] : memref<1x32xf32, #tpu.memory_space<vmem>>, vector<1x32xf32>
    %16 = vector.broadcast %15 : vector<1x32xf32> to vector<4x32xf32>
    %17 = arith.addf %14, %16 : vector<4x32xf32>
    %18 = vector.extract_strided_slice %17 {offsets = [0, 0], sizes = [2, 32], strides = [1, 1]} : vector<4x32xf32> to vector<2x32xf32>
    %19 = vector.extract_strided_slice %17 {offsets = [2, 0], sizes = [2, 32], strides = [1, 1]} : vector<4x32xf32> to vector<2x32xf32>
    %20 = arith.addf %18, %19 : vector<2x32xf32>
    %21 = arith.negf %20 : vector<2x32xf32>
    %22 = math.exp %21 : vector<2x32xf32>
    %cst_15 = arith.constant 1.000000e+00 : f32
    %23 = vector.broadcast %cst_15 : f32 to vector<2x32xf32>
    %24 = arith.addf %23, %22 : vector<2x32xf32>
    %25 = arith.divf %23, %24 : vector<2x32xf32>
    %26 = vector.shape_cast %25 : vector<2x32xf32> to vector<2x32x1xf32>
    %27 = vector.broadcast %26 : vector<2x32x1xf32> to vector<2x32x256xf32>
    %28 = arith.mulf %0, %27 : vector<2x32x256xf32>
    %cst_16 = arith.constant dense<0.000000e+00> : vector<2x256xf32>
    %29 = vector.multi_reduction <add>, %28, %cst_16 [1] : vector<2x32x256xf32> to vector<2x256xf32>
    %cst_17 = arith.constant 3.200000e+01 : f32
    %30 = vector.broadcast %cst_17 : f32 to vector<2x256xf32>
    %31 = arith.divf %29, %30 : vector<2x256xf32>
    %cst_18 = arith.constant dense<0xFF800000> : vector<2x256xf32>
    %32 = vector.multi_reduction <maximumf>, %28, %cst_18 [1] : vector<2x32x256xf32> to vector<2x256xf32>
    %33 = tpu.concatenate %31, %32 in 1 : vector<2x256xf32>, vector<2x256xf32> -> vector<2x512xf32>
    %c0_19 = arith.constant 0 : index
    %c0_20 = arith.constant 0 : index
    %34 = vector.load %arg6[%c0_19, %c0_20] : memref<512x256xf32, #tpu.memory_space<vmem>>, vector<512x256xf32>
    %cst_21 = arith.constant dense<0.000000e+00> : vector<2x256xf32>
    %35 = tpu.matmul %33, %34, %cst_21 {dimension_numbers = #tpu.dot_dimension_numbers<[1], [0], [0], [1], [0, 0, 1, 1], [], []>} : vector<2x512xf32>, vector<512x256xf32>, vector<2x256xf32> -> vector<2x256xf32>
    %c0_22 = arith.constant 0 : index
    %c0_23 = arith.constant 0 : index
    %36 = vector.load %arg7[%c0_22, %c0_23] : memref<1x256xf32, #tpu.memory_space<vmem>>, vector<1x256xf32>
    %37 = vector.broadcast %36 : vector<1x256xf32> to vector<2x256xf32>
    %38 = arith.addf %35, %37 : vector<2x256xf32>
    %39 = arith.negf %38 : vector<2x256xf32>
    %40 = math.exp %39 : vector<2x256xf32>
    %cst_24 = arith.constant 1.000000e+00 : f32
    %41 = vector.broadcast %cst_24 : f32 to vector<2x256xf32>
    %42 = arith.addf %41, %40 : vector<2x256xf32>
    %43 = arith.divf %41, %42 : vector<2x256xf32>
    %44 = vector.shape_cast %43 : vector<2x256xf32> to vector<2x1x256xf32>
    %45 = vector.broadcast %44 : vector<2x1x256xf32> to vector<2x32x256xf32>
    %46 = arith.mulf %28, %45 : vector<2x32x256xf32>
    %c0_25 = arith.constant 0 : index
    %c0_26 = arith.constant 0 : index
    %c0_27 = arith.constant 0 : index
    %47 = vector.load %arg8[%c0_25, %c0_26, %c0_27] : memref<2x32x256xf32, #tpu.memory_space<vmem>>, vector<2x32x256xf32>
    tpu.vector_store %arg8[%c0_25, %c0_26, %c0_27], %46 {strides = array<i32>} : memref<2x32x256xf32, #tpu.memory_space<vmem>>, vector<2x32x256xf32>,
    return
  }
  func.func @transform_0(%arg0: i32) -> (i32, i32, i32) {
    %c0_i32 = arith.constant 0 : i32
    %c0_i32_0 = arith.constant 0 : i32
    %c0_i32_1 = arith.constant 0 : i32
    return %arg0, %c0_i32, %c0_i32_0 : i32, i32, i32
  }
  func.func @transform_1(%arg0: i32) -> (i32, i32) {
    %c0_i32 = arith.constant 0 : i32
    %c0_i32_0 = arith.constant 0 : i32
    %c0_i32_1 = arith.constant 0 : i32
    return %c0_i32, %c0_i32_0 : i32, i32
  }
  func.func @transform_2(%arg0: i32) -> (i32, i32) {
    %c0_i32 = arith.constant 0 : i32
    %c0_i32_0 = arith.constant 0 : i32
    %c0_i32_1 = arith.constant 0 : i32
    return %c0_i32, %c0_i32_0 : i32, i32
  }
  func.func @transform_3(%arg0: i32) -> (i32, i32) {
    %c0_i32 = arith.constant 0 : i32
    %c0_i32_0 = arith.constant 0 : i32
    %c0_i32_1 = arith.constant 0 : i32
    return %c0_i32, %c0_i32_0 : i32, i32
  }
  func.func @transform_4(%arg0: i32) -> (i32, i32) {
    %c0_i32 = arith.constant 0 : i32
    %c0_i32_0 = arith.constant 0 : i32
    %c0_i32_1 = arith.constant 0 : i32
    return %c0_i32, %c0_i32_0 : i32, i32
  }
  func.func @transform_5(%arg0: i32) -> (i32, i32) {
    %c0_i32 = arith.constant 0 : i32
    %c0_i32_0 = arith.constant 0 : i32
    %c0_i32_1 = arith.constant 0 : i32
    return %c0_i32, %c0_i32_0 : i32, i32
  }
  func.func @transform_6(%arg0: i32) -> (i32, i32) {
    %c0_i32 = arith.constant 0 : i32
    %c0_i32_0 = arith.constant 0 : i32
    %c0_i32_1 = arith.constant 0 : i32
    return %c0_i32, %c0_i32_0 : i32, i32
  }
  func.func @transform_7(%arg0: i32) -> (i32, i32, i32) {
    %c0_i32 = arith.constant 0 : i32
    %c0_i32_0 = arith.constant 0 : i32
    %c0_i32_1 = arith.constant 0 : i32
    return %arg0, %c0_i32, %c0_i32_0 : i32, i32, i32
  }
}

module attributes {stable_mosaic.version = 11 : i64} {
  func.func @cbam_fused_kernel(%arg0: i32, %arg1: memref<2x32x256xf32, #tpu.memory_space<vmem>>, %arg2: memref<32x2xf32, #tpu.memory_space<vmem>>, %arg3: memref<1x2xf32, #tpu.memory_space<vmem>>, %arg4: memref<2x32xf32, #tpu.memory_space<vmem>>, %arg5: memref<1x32xf32, #tpu.memory_space<vmem>>, %arg6: memref<512x256xf32, #tpu.memory_space<vmem>>, %arg7: memref<1x256xf32, #tpu.memory_space<vmem>>, %arg8: memref<2x32x256xf32, #tpu.memory_space<vmem>>) attributes {dimension_semantics = [#tpu.dimension_semantics<parallel>], iteration_bounds = array<i64: 1>, scalar_prefetch = 0 : i64, scratch_operands = 0 : i64, tpu.core_type = #tpu.core_type<tc>, window_params = [{transform_indices = @transform_0, window_bounds = array<i64: 2, 32, 256>}, {pipeline_mode = #tpu.pipeline_mode<synchronous>, transform_indices = @transform_1, window_bounds = array<i64: 32, 2>}, {pipeline_mode = #tpu.pipeline_mode<synchronous>, transform_indices = @transform_2, window_bounds = array<i64: 1, 2>}, {pipeline_mode = #tpu.pipeline_mode<synchronous>, transform_indices = @transform_3, window_bounds = array<i64: 2, 32>}, {pipeline_mode = #tpu.pipeline_mode<synchronous>, transform_indices = @transform_4, window_bounds = array<i64: 1, 32>}, {pipeline_mode = #tpu.pipeline_mode<synchronous>, transform_indices = @transform_5, window_bounds = array<i64: 512, 256>}, {pipeline_mode = #tpu.pipeline_mode<synchronous>, transform_indices = @transform_6, window_bounds = array<i64: 1, 256>}, {transform_indices = @transform_7, window_bounds = array<i64: 2, 32, 256>}]} {
    %c0 = arith.constant 0 : index
    %c0_0 = arith.constant 0 : index
    %c0_1 = arith.constant 0 : index
    %0 = vector.load %arg1[%c0, %c0_0, %c0_1] : memref<2x32x256xf32, #tpu.memory_space<vmem>>, vector<2x32x256xf32>
    %cst = arith.constant dense<0.000000e+00> : vector<2x32xf32>
    %1 = vector.multi_reduction <add>, %0, %cst [2] : vector<2x32x256xf32> to vector<2x32xf32>
    %cst_2 = arith.constant 2.560000e+02 : f32
    %2 = vector.broadcast %cst_2 : f32 to vector<2x32xf32>
    %3 = arith.divf %1, %2 : vector<2x32xf32>
    %cst_3 = arith.constant dense<0xFF800000> : vector<2x32xf32>
    %4 = vector.multi_reduction <maximumf>, %0, %cst_3 [2] : vector<2x32x256xf32> to vector<2x32xf32>
    %5 = tpu.concatenate %3, %4 in 0 : vector<2x32xf32>, vector<2x32xf32> -> vector<4x32xf32>
    %c0_4 = arith.constant 0 : index
    %c0_5 = arith.constant 0 : index
    %6 = vector.load %arg2[%c0_4, %c0_5] : memref<32x2xf32, #tpu.memory_space<vmem>>, vector<32x2xf32>
    %cst_6 = arith.constant dense<0.000000e+00> : vector<4x2xf32>
    %7 = tpu.matmul %5, %6, %cst_6 {dimension_numbers = #tpu.dot_dimension_numbers<[1], [0], [0], [1], [0, 0, 1, 1], [], []>} : vector<4x32xf32>, vector<32x2xf32>, vector<4x2xf32> -> vector<4x2xf32>
    %c0_7 = arith.constant 0 : index
    %c0_8 = arith.constant 0 : index
    %8 = vector.load %arg3[%c0_7, %c0_8] : memref<1x2xf32, #tpu.memory_space<vmem>>, vector<1x2xf32>
    %9 = vector.broadcast %8 : vector<1x2xf32> to vector<4x2xf32>
    %10 = arith.addf %7, %9 : vector<4x2xf32>
    %cst_9 = arith.constant 0.000000e+00 : f32
    %11 = vector.broadcast %cst_9 : f32 to vector<4x2xf32>
    %12 = arith.maximumf %10, %11 : vector<4x2xf32>
    %c0_10 = arith.constant 0 : index
    %c0_11 = arith.constant 0 : index
    %13 = vector.load %arg4[%c0_10, %c0_11] : memref<2x32xf32, #tpu.memory_space<vmem>>, vector<2x32xf32>
    %cst_12 = arith.constant dense<0.000000e+00> : vector<4x32xf32>
    %14 = tpu.matmul %12, %13, %cst_12 {dimension_numbers = #tpu.dot_dimension_numbers<[1], [0], [0], [1], [0, 0, 1, 1], [], []>} : vector<4x2xf32>, vector<2x32xf32>, vector<4x32xf32> -> vector<4x32xf32>
    %c0_13 = arith.constant 0 : index
    %c0_14 = arith.constant 0 : index
    %15 = vector.load %arg5[%c0_13, %c0_14] : memref<1x32xf32, #tpu.memory_space<vmem>>, vector<1x32xf32>
    %16 = vector.broadcast %15 : vector<1x32xf32> to vector<4x32xf32>
    %17 = arith.addf %14, %16 : vector<4x32xf32>
    %18 = vector.extract_strided_slice %17 {offsets = [0, 0], sizes = [2, 32], strides = [1, 1]} : vector<4x32xf32> to vector<2x32xf32>
    %19 = vector.extract_strided_slice %17 {offsets = [2, 0], sizes = [2, 32], strides = [1, 1]} : vector<4x32xf32> to vector<2x32xf32>
    %20 = arith.addf %18, %19 : vector<2x32xf32>
    %21 = arith.negf %20 : vector<2x32xf32>
    %22 = math.exp %21 : vector<2x32xf32>
    %cst_15 = arith.constant 1.000000e+00 : f32
    %23 = vector.broadcast %cst_15 : f32 to vector<2x32xf32>
    %24 = arith.addf %23, %22 : vector<2x32xf32>
    %25 = arith.divf %23, %24 : vector<2x32xf32>
    %26 = vector.shape_cast %25 : vector<2x32xf32> to vector<2x32x1xf32>
    %27 = vector.broadcast %26 : vector<2x32x1xf32> to vector<2x32x256xf32>
    %28 = arith.mulf %0, %27 : vector<2x32x256xf32>
    %cst_16 = arith.constant dense<0.000000e+00> : vector<2x256xf32>
    %29 = vector.multi_reduction <add>, %28, %cst_16 [1] : vector<2x32x256xf32> to vector<2x256xf32>
    %cst_17 = arith.constant 3.200000e+01 : f32
    %30 = vector.broadcast %cst_17 : f32 to vector<2x256xf32>
    %31 = arith.divf %29, %30 : vector<2x256xf32>
    %cst_18 = arith.constant dense<0xFF800000> : vector<2x256xf32>
    %32 = vector.multi_reduction <maximumf>, %28, %cst_18 [1] : vector<2x32x256xf32> to vector<2x256xf32>
    %33 = tpu.concatenate %31, %32 in 1 : vector<2x256xf32>, vector<2x256xf32> -> vector<2x512xf32>
    %c0_19 = arith.constant 0 : index
    %c0_20 = arith.constant 0 : index
    %34 = vector.load %arg6[%c0_19, %c0_20] : memref<512x256xf32, #tpu.memory_space<vmem>>, vector<512x256xf32>
    %cst_21 = arith.constant dense<0.000000e+00> : vector<2x256xf32>
    %35 = tpu.matmul %33, %34, %cst_21 {dimension_numbers = #tpu.dot_dimension_numbers<[1], [0], [0], [1], [0, 0, 1, 1], [], []>} : vector<2x512xf32>, vector<512x256xf32>, vector<2x256xf32> -> vector<2x256xf32>
    %c0_22 = arith.constant 0 : index
    %c0_23 = arith.constant 0 : index
    %36 = vector.load %arg7[%c0_22, %c0_23] : memref<1x256xf32, #tpu.memory_space<vmem>>, vector<1x256xf32>
    %37 = vector.broadcast %36 : vector<1x256xf32> to vector<2x256xf32>
    %38 = arith.addf %35, %37 : vector<2x256xf32>
    %39 = arith.negf %38 : vector<2x256xf32>
    %40 = math.exp %39 : vector<2x256xf32>
    %cst_24 = arith.constant 1.000000e+00 : f32
    %41 = vector.broadcast %cst_24 : f32 to vector<2x256xf32>
    %42 = arith.addf %41, %40 : vector<2x256xf32>
    %43 = arith.divf %41, %42 : vector<2x256xf32>
    %44 = vector.shape_cast %43 : vector<2x256xf32> to vector<2x1x256xf32>
    %45 = vector.broadcast %44 : vector<2x1x256xf32> to vector<2x32x256xf32>
    %46 = arith.mulf %28, %45 : vector<2x32x256xf32>
    %c0_25 = arith.constant 0 : index
    %c0_26 = arith.constant 0 : index
    %c0_27 = arith.constant 0 : index
    %47 = vector.load %arg8[%c0_25, %c0_26, %c0_27] : memref<2x32x256xf32, #tpu.memory_space<vmem>>, vector<2x32x256xf32>
    tpu.vector_store %arg8[%c0_25, %c0_26, %c0_27], %46 {strides = array<i32>} : memref<2x32x256xf32, #tpu.memory_space<vmem>>, vector<2x32x256xf32>,
    return
  }
  func.func @transform_0(%arg0: i32) -> (i32, i32, i32) {
    %c0_i32 = arith.constant 0 : i32
    %c0_i32_0 = arith.constant 0 : i32
    %c0_i32_1 = arith.constant 0 : i32
    return %arg0, %c0_i32, %c0_i32_0 : i32, i32, i32
  }
  func.func @transform_1(%arg0: i32) -> (i32, i32) {
    %c0_i32 = arith.constant 0 : i32
    %c0_i32_0 = arith.constant 0 : i32
    %c0_i32_1 = arith.constant 0 : i32
    return %c0_i32, %c0_i32_0 : i32, i32
  }
  func.func @transform_2(%arg0: i32) -> (i32, i32) {
    %c0_i32 = arith.constant 0 : i32
    %c0_i32_0 = arith.constant 0 : i32
    %c0_i32_1 = arith.constant 0 : i32
    return %c0_i32, %c0_i32_0 : i32, i32
  }
  func.func @transform_3(%arg0: i32) -> (i32, i32) {
    %c0_i32 = arith.constant 0 : i32
    %c0_i32_0 = arith.constant 0 : i32
    %c0_i32_1 = arith.constant 0 : i32
    return %c0_i32, %c0_i32_0 : i32, i32
  }
  func.func @transform_4(%arg0: i32) -> (i32, i32) {
    %c0_i32 = arith.constant 0 : i32
    %c0_i32_0 = arith.constant 0 : i32
    %c0_i32_1 = arith.constant 0 : i32
    return %c0_i32, %c0_i32_0 : i32, i32
  }
  func.func @transform_5(%arg0: i32) -> (i32, i32) {
    %c0_i32 = arith.constant 0 : i32
    %c0_i32_0 = arith.constant 0 : i32
    %c0_i32_1 = arith.constant 0 : i32
    return %c0_i32, %c0_i32_0 : i32, i32
  }
  func.func @transform_6(%arg0: i32) -> (i32, i32) {
    %c0_i32 = arith.constant 0 : i32
    %c0_i32_0 = arith.constant 0 : i32
    %c0_i32_1 = arith.constant 0 : i32
    return %c0_i32, %c0_i32_0 : i32, i32
  }
  func.func @transform_7(%arg0: i32) -> (i32, i32, i32) {
    %c0_i32 = arith.constant 0 : i32
    %c0_i32_0 = arith.constant 0 : i32
    %c0_i32_1 = arith.constant 0 : i32
    return %arg0, %c0_i32, %c0_i32_0 : i32, i32, i32
  }
}

</mosaic_0001>

<llo_original>
// kernel: tpu_custom_call.1
$region0: #{tpu_custom_call.1}
  #allocation0 [shape = 'u32[]', space=smem, size = 0x4, offset = 0x4, fixed_abs, tag = 'smem constant byte address 0x4 - core index']
  #allocation1 [shape = 'u32[144,128]{1,0:T(1,128)}', space=vmem, size = 0x12000, scoped, tag = 'internal scratch']
  %s0 = inlined_call_operand.hbm [shape: f32[2,32,256], index: 0, kind: input, shape index: {}]
  %s1 = inlined_call_operand.vmem [shape: f32[32,2], index: 1, kind: input, shape index: {}]
  %s2 = inlined_call_operand.vmem [shape: f32[1,2], index: 2, kind: input, shape index: {}]
  %s3 = inlined_call_operand.vmem [shape: f32[2,32], index: 3, kind: input, shape index: {}]
  %s4 = inlined_call_operand.vmem [shape: f32[1,32], index: 4, kind: input, shape index: {}]
  %s5 = inlined_call_operand.hbm [shape: f32[512,256], index: 5, kind: input, shape index: {}]
  %s6 = inlined_call_operand.vmem [shape: f32[1,256], index: 6, kind: input, shape index: {}]
  %s7 = inlined_call_operand.hbm [shape: f32[2,32,256], index: 7, kind: output, shape index: {}]
  %s8 = sld [smem:[#allocation0]]
  $region46: #{tpu_custom_call.1} parent=0
    _
  %s10 = ssub.s32 1, %s8
  %s11 = scalar_select 0, %s10, %s8
  $region1: #{tpu_custom_call.1} parent=0
    #allocation2 [shape = 'u8[65536]{0}', space=vmem, size = 0x10000, scoped, tag = 'input window, operand 0, single buffered']
    #allocation3 [shape = 's32[1]{0}', space=sflag, size = 0x4, scoped, tag = 'scoped memory for tpu_custom_call.1']
    #allocation4 [shape = 's32[1]{0}', space=sflag, size = 0x4, scoped, tag = 'scoped memory for tpu_custom_call.1']
    #allocation5 [shape = 'u8[524288]{0}', space=vmem, size = 0x80000, scoped, tag = 'input window, operand 5, single buffered']
    #allocation6 [shape = 's32[1]{0}', space=sflag, size = 0x4, scoped, tag = 'scoped memory for tpu_custom_call.1']
    #allocation7 [shape = 'u8[65536]{0}', space=vmem, size = 0x10000, scoped, tag = 'output window, operand 0, single buffered']
    %12 = vsyncpa [#allocation3], 0
    %13 = vsyncpa [#allocation6], 0
    %14 = vsyncpa [#allocation4], 0
    // Predicated region
    $region2: #{tpu_custom_call.1} parent=1 // pred_check
      _
    $region3: #{tpu_custom_call.1} parent=1 // pred_check_branch
      %16 = sbr.rel (0) target = $region5
    $region4: #{tpu_custom_call.1} parent=1 // pred_region
      %s18 = ssub.s32 2048, 2048
      %19 = vsyncadd [#allocation3], %s18
      %s20 = sshll.u32 [#allocation2], 4
      %s21 = int_to_ptr.vmem [resolvable:$true] %s20
      %26 = dma.hbm_to_vmem [thread:$0]  %s0, 2048, %s21, [#allocation3], 256, 256, 16
    $region5: #{tpu_custom_call.1} parent=1 // pred_fallthru
      _
    // Predicated region
    $region6: #{tpu_custom_call.1} parent=1 // pred_check
      _
    $region7: #{tpu_custom_call.1} parent=1 // pred_check_branch
      %28 = sbr.rel (0) target = $region9
    $region8: #{tpu_custom_call.1} parent=1 // pred_region
      _
    $region9: #{tpu_custom_call.1} parent=1 // pred_fallthru
      _
    // Predicated region
    $region10: #{tpu_custom_call.1} parent=1 // pred_check
      _
    $region11: #{tpu_custom_call.1} parent=1 // pred_check_branch
      %30 = sbr.rel (0) target = $region13
    $region12: #{tpu_custom_call.1} parent=1 // pred_region
      _
    $region13: #{tpu_custom_call.1} parent=1 // pred_fallthru
      _
    // Predicated region
    $region14: #{tpu_custom_call.1} parent=1 // pred_check
      _
    $region15: #{tpu_custom_call.1} parent=1 // pred_check_branch
      %32 = sbr.rel (0) target = $region17
    $region16: #{tpu_custom_call.1} parent=1 // pred_region
      _
    $region17: #{tpu_custom_call.1} parent=1 // pred_fallthru
      _
    // Predicated region
    $region18: #{tpu_custom_call.1} parent=1 // pred_check
      _
    $region19: #{tpu_custom_call.1} parent=1 // pred_check_branch
      %34 = sbr.rel (0) target = $region21
    $region20: #{tpu_custom_call.1} parent=1 // pred_region
      _
    $region21: #{tpu_custom_call.1} parent=1 // pred_fallthru
      _
    // Predicated region
    $region22: #{tpu_custom_call.1} parent=1 // pred_check
      _
    $region23: #{tpu_custom_call.1} parent=1 // pred_check_branch
      %36 = sbr.rel (0) target = $region25
    $region24: #{tpu_custom_call.1} parent=1 // pred_region
      %s38 = ssub.s32 16384, 16384
      %39 = vsyncadd [#allocation6], %s38
      %s40 = sshll.u32 [#allocation5], 4
      %s41 = int_to_ptr.vmem [resolvable:$true] %s40
      %46 = dma.hbm_to_vmem [thread:$0]  %s5, 16384, %s41, [#allocation6], 256, 256, 16
    $region25: #{tpu_custom_call.1} parent=1 // pred_fallthru
      _
    // Predicated region
    $region26: #{tpu_custom_call.1} parent=1 // pred_check
      _
    $region27: #{tpu_custom_call.1} parent=1 // pred_check_branch
      %48 = sbr.rel (0) target = $region29
    $region28: #{tpu_custom_call.1} parent=1 // pred_region
      _
    $region29: #{tpu_custom_call.1} parent=1 // pred_fallthru
      _
    // Predicated region
    $region30: #{tpu_custom_call.1} parent=1 // pred_check
      _
    $region31: #{tpu_custom_call.1} parent=1 // pred_check_branch
      %50 = sbr.rel (0) target = $region33
    $region32: #{tpu_custom_call.1} parent=1 // pred_region
      %51 = dma.done [#allocation3], 2048
    $region33: #{tpu_custom_call.1} parent=1 // pred_fallthru
      _
    // Predicated region
    $region34: #{tpu_custom_call.1} parent=1 // pred_check
      _
    $region35: #{tpu_custom_call.1} parent=1 // pred_check_branch
      %53 = sbr.rel (0) target = $region37
    $region36: #{tpu_custom_call.1} parent=1 // pred_region
      %54 = dma.done [#allocation6], 16384
    $region37: #{tpu_custom_call.1} parent=1 // pred_fallthru
      _
    %v55 = vld [vmem:[#allocation2] sm:$0xff]
    %v56 = vld [vmem:[#allocation2 + $0x8] sm:$0xff]
    %v57 = vld [vmem:[#allocation2 + $0x10] sm:$0xff]
    %v58 = vld [vmem:[#allocation2 + $0x18] sm:$0xff]
    %v59 = vld [vmem:[#allocation2 + $0x20] sm:$0xff]
    %v60 = vld [vmem:[#allocation2 + $0x28] sm:$0xff]
    %v61 = vld [vmem:[#allocation2 + $0x30] sm:$0xff]
    %v62 = vld [vmem:[#allocation2 + $0x38] sm:$0xff]
    %v63 = vld [vmem:[#allocation2 + $0x40] sm:$0xff]
    %v64 = vld [vmem:[#allocation2 + $0x48] sm:$0xff]
    %v65 = vld [vmem:[#allocation2 + $0x50] sm:$0xff]
    %v66 = vld [vmem:[#allocation2 + $0x58] sm:$0xff]
    %v67 = vld [vmem:[#allocation2 + $0x60] sm:$0xff]
    %v68 = vld [vmem:[#allocation2 + $0x68] sm:$0xff]
    %v69 = vld [vmem:[#allocation2 + $0x70] sm:$0xff]
    %v70 = vld [vmem:[#allocation2 + $0x78] sm:$0xff]
    %v71 = vadd.f32 %v55, %v56
    %72 = vadd.xlane.f32.xlu0 %v71
    %v73 = vpop.xlane.xlu0 %72
    %v74 = vadd.f32 %v57, %v58
    %75 = vadd.xlane.f32.xlu0 %v74
    %v76 = vpop.xlane.xlu0 %75
    %v77 = vadd.f32 %v59, %v60
    %78 = vadd.xlane.f32.xlu0 %v77
    %v79 = vpop.xlane.xlu0 %78
    %v80 = vadd.f32 %v61, %v62
    %81 = vadd.xlane.f32.xlu0 %v80
    %v82 = vpop.xlane.xlu0 %81
    %v83 = vadd.f32 %v63, %v64
    %84 = vadd.xlane.f32.xlu0 %v83
    %v85 = vpop.xlane.xlu0 %84
    %v86 = vadd.f32 %v65, %v66
    %87 = vadd.xlane.f32.xlu0 %v86
    %v88 = vpop.xlane.xlu0 %87
    %v89 = vadd.f32 %v67, %v68
    %90 = vadd.xlane.f32.xlu0 %v89
    %v91 = vpop.xlane.xlu0 %90
    %v92 = vadd.f32 %v69, %v70
    %93 = vadd.xlane.f32.xlu0 %v92
    %v94 = vpop.xlane.xlu0 %93
    %v95 = vrcp.pop 256.0
    %v96 = vmul.f32 %v73, %v95
    %v97 = vmul.f32 %v76, %v95
    %v98 = vmul.f32 %v79, %v95
    %v99 = vmul.f32 %v82, %v95
    %v100 = vmul.f32 %v85, %v95
    %v101 = vmul.f32 %v88, %v95
    %v102 = vmul.f32 %v91, %v95
    %v103 = vmul.f32 %v94, %v95
    %v104 = vmax.f32 %v55, %v56
    %105 = vmax.xlane.f32.xlu0 %v104
    %v106 = vpop.xlane.xlu0 %105
    %v107 = vmax.f32 %v57, %v58
    %108 = vmax.xlane.f32.xlu0 %v107
    %v109 = vpop.xlane.xlu0 %108
    %v110 = vmax.f32 %v59, %v60
    %111 = vmax.xlane.f32.xlu0 %v110
    %v112 = vpop.xlane.xlu0 %111
    %v113 = vmax.f32 %v61, %v62
    %114 = vmax.xlane.f32.xlu0 %v113
    %v115 = vpop.xlane.xlu0 %114
    %v116 = vmax.f32 %v63, %v64
    %117 = vmax.xlane.f32.xlu0 %v116
    %v118 = vpop.xlane.xlu0 %117
    %v119 = vmax.f32 %v65, %v66
    %120 = vmax.xlane.f32.xlu0 %v119
    %v121 = vpop.xlane.xlu0 %120
    %v122 = vmax.f32 %v67, %v68
    %123 = vmax.xlane.f32.xlu0 %v122
    %v124 = vpop.xlane.xlu0 %123
    %v125 = vmax.f32 %v69, %v70
    %126 = vmax.xlane.f32.xlu0 %v125
    %v127 = vpop.xlane.xlu0 %126
    %v136 = vlaneseq
    %v137 = vand.u32 %v136, 127
    %v138 = vlaneseq
    %v139 = vshrl.u32 %v138, 7
    %v140 = vsub.s32 %v137, %v139
    %v141 = vrot.slane %v96, %v140
    %v142 = vadd.s32 %v137, 4294967288
    %v143 = vlaneseq
    %v144 = vshrl.u32 %v143, 7
    %v145 = vsub.s32 %v142, %v144
    %v146 = vrot.slane %v97, %v145
    %vm147 = vcmask 130112
    %v148 = vsel %vm147, %v146, %v141
    %v149 = vadd.s32 %v137, 4294967280
    %v150 = vlaneseq
    %v151 = vshrl.u32 %v150, 7
    %v152 = vsub.s32 %v149, %v151
    %v153 = vrot.slane %v98, %v152
    %vm154 = vcmask 195712
    %v155 = vsel %vm154, %v153, %v148
    %v156 = vadd.s32 %v137, 4294967272
    %v157 = vlaneseq
    %v158 = vshrl.u32 %v157, 7
    %v159 = vsub.s32 %v156, %v158
    %v160 = vrot.slane %v99, %v159
    %vm161 = vcmask 261312
    %v162 = vsel %vm161, %v160, %v155
    %v163 = vlaneseq
    %v164 = vshrl.u32 %v163, 7
    %v165 = vsub.s32 %v137, %v164
    %v166 = vrot.slane %v100, %v165
    %v167 = vlaneseq
    %v168 = vshrl.u32 %v167, 7
    %v169 = vsub.s32 %v142, %v168
    %v170 = vrot.slane %v101, %v169
    %v171 = vsel %vm147, %v170, %v166
    %v172 = vlaneseq
    %v173 = vshrl.u32 %v172, 7
    %v174 = vsub.s32 %v149, %v173
    %v175 = vrot.slane %v102, %v174
    %v176 = vsel %vm154, %v175, %v171
    %v177 = vlaneseq
    %v178 = vshrl.u32 %v177, 7
    %v179 = vsub.s32 %v156, %v178
    %v180 = vrot.slane %v103, %v179
    %v181 = vsel %vm161, %v180, %v176
    %vm182 = vcmask 1041409
    %v183 = vsel %vm182, %v181, %v162
    %v193 = vlaneseq
    %v194 = vshrl.u32 %v193, 7
    %v195 = vsub.s32 %v137, %v194
    %v196 = vrot.slane %v106, %v195
    %v197 = vlaneseq
    %v198 = vshrl.u32 %v197, 7
    %v199 = vsub.s32 %v142, %v198
    %v200 = vrot.slane %v109, %v199
    %v201 = vsel %vm147, %v200, %v196
    %v202 = vlaneseq
    %v203 = vshrl.u32 %v202, 7
    %v204 = vsub.s32 %v149, %v203
    %v205 = vrot.slane %v112, %v204
    %v206 = vsel %vm154, %v205, %v201
    %v207 = vlaneseq
    %v208 = vshrl.u32 %v207, 7
    %v209 = vsub.s32 %v156, %v208
    %v210 = vrot.slane %v115, %v209
    %v211 = vsel %vm161, %v210, %v206
    %v212 = vlaneseq
    %v213 = vshrl.u32 %v212, 7
    %v214 = vsub.s32 %v137, %v213
    %v215 = vrot.slane %v118, %v214
    %v216 = vlaneseq
    %v217 = vshrl.u32 %v216, 7
    %v218 = vsub.s32 %v142, %v217
    %v219 = vrot.slane %v121, %v218
    %v220 = vsel %vm147, %v219, %v215
    %v221 = vlaneseq
    %v222 = vshrl.u32 %v221, 7
    %v223 = vsub.s32 %v149, %v222
    %v224 = vrot.slane %v124, %v223
    %v225 = vsel %vm154, %v224, %v220
    %v226 = vlaneseq
    %v227 = vshrl.u32 %v226, 7
    %v228 = vsub.s32 %v156, %v227
    %v229 = vrot.slane %v127, %v228
    %v230 = vsel %vm161, %v229, %v225
    %vm231 = vcmask 1043459
    %v232 = vsel %vm231, %v230, %v211
    %vm234 = vcmask 1041408
    %v235 = vsel %vm234, %v183, %v232
    %v236 = vld [vmem:[%s1] sm:$0xff]
    %v237 = vld [vmem:[%s1 + $0x8] sm:$0xff]
    %v238 = vld [vmem:[%s1 + $0x10] sm:$0xff]
    %v239 = vld [vmem:[%s1 + $0x18] sm:$0xff]
    %v240 = vld [vmem:[%s2] sm:$0x1]
    %v242 = vlaneseq
    %v243 = vshrl.u32 %v242, 7
    %v244 = vsub.s32 0, %v243
    %v245 = vrot.slane %v240, %v244
    %vm247 = vcmask 261120
    %v249 = vsel %vm247, %v235, 0
    %251 = vmatprep.subr.mxu0 0.0
    %252 = vmatpush1.msra.mxu0 0.0
    %253 = vmatprep.subr.mxu0 0.0
    %254 = vmatpush1.msra.mxu0 0.0
    %255 = vmatprep.subr.mxu0 0.0
    %256 = vmatpush1.msra.mxu0 0.0
    %257 = vmatprep.subr.mxu0 0.0
    %258 = vmatpush1.msra.mxu0 0.0
    %259 = vmatprep.subr.mxu0 0.0
    %260 = vmatpush1.msra.mxu0 0.0
    %261 = vmatprep.subr.mxu0 0.0
    %262 = vmatpush1.msra.mxu0 0.0
    %263 = vmatprep.subr.mxu0 0.0
    %264 = vmatpush1.msra.mxu0 0.0
    %265 = vmatprep.subr.mxu0 0.0
    %266 = vmatpush1.msra.mxu0 0.0
    %267 = vmatprep.subr.mxu0 0.0
    %268 = vmatpush1.msra.mxu0 0.0
    %269 = vmatprep.subr.mxu0 0.0
    %270 = vmatpush1.msra.mxu0 0.0
    %271 = vmatprep.subr.mxu0 0.0
    %272 = vmatpush1.msra.mxu0 0.0
    %273 = vmatprep.subr.mxu0 0.0
    %274 = vmatpush1.msra.mxu0 0.0
    %275 = vmatprep.subr.mxu0 0.0
    %276 = vmatpush1.msra.mxu0 %v239
    %277 = vmatprep.subr.mxu0 0.0
    %278 = vmatpush1.msra.mxu0 %v238
    %279 = vmatprep.subr.mxu0 0.0
    %280 = vmatpush1.msra.mxu0 %v237
    %281 = vmatprep.subr.mxu0 0.0
    %282 = vmatpush1.msra.mxu0 %v236
    %283 = vmatprep.subr.mxu0 0.0
    %284 = vmatpush2.msra.mxu0 0.0
    %285 = vmatprep.subr.mxu0 0.0
    %286 = vmatpush2.msra.mxu0 0.0
    %287 = vmatprep.subr.mxu0 0.0
    %288 = vmatpush2.msra.mxu0 0.0
    %289 = vmatprep.subr.mxu0 0.0
    %290 = vmatpush2.msra.mxu0 0.0
    %291 = vmatprep.subr.mxu0 0.0
    %292 = vmatpush2.msra.mxu0 0.0
    %293 = vmatprep.subr.mxu0 0.0
    %294 = vmatpush2.msra.mxu0 0.0
    %295 = vmatprep.subr.mxu0 0.0
    %296 = vmatpush2.msra.mxu0 0.0
    %297 = vmatprep.subr.mxu0 0.0
    %298 = vmatpush2.msra.mxu0 0.0
    %299 = vmatprep.subr.mxu0 0.0
    %300 = vmatpush2.msra.mxu0 0.0
    %301 = vmatprep.subr.mxu0 0.0
    %302 = vmatpush2.msra.mxu0 0.0
    %303 = vmatprep.subr.mxu0 0.0
    %304 = vmatpush2.msra.mxu0 0.0
    %305 = vmatprep.subr.mxu0 0.0
    %306 = vmatpush2.msra.mxu0 0.0
    %307 = vmatprep.subr.mxu0 0.0
    %308 = vmatpush2.msra.mxu0 0.0
    %309 = vmatprep.subr.mxu0 0.0
    %310 = vmatpush2.msra.mxu0 0.0
    %311 = vmatprep.subr.mxu0 0.0
    %312 = vmatpush2.msra.mxu0 0.0
    %313 = vmatprep.subr.mxu0 0.0
    %314 = vmatpush2.msra.mxu0 0.0
    %315 = vmatprep.mubr.f32.mxu0 0.0
    %316 = vmatmul.mubr.f32.gmra.mxu0 %v249
    %v317 = vpop.f32.mrf.mxu0
    %v318 = vadd.f32 %v245, %v317
    %v319 = vpop.f32.mrf.mxu0
    %320 = vdwg.mxu0
    %v321 = vmax.f32 %v318, 0.0
    %v322 = vld [vmem:[%s3] sm:$0x3]
    %v323 = vld [vmem:[%s4] sm:$0x1]
    %v325 = vlaneseq
    %v326 = vshrl.u32 %v325, 7
    %v327 = vsub.s32 0, %v326
    %v328 = vrot.slane %v323, %v327
    %vm330 = vcmask 15360
    %v332 = vsel %vm330, %v321, 0
    %v335 = vsel %vm234, %v322, 0
    %337 = vmatprep.subr.mxu0 0.0
    %338 = vmatpush1.msra.mxu0 0.0
    %339 = vmatprep.subr.mxu0 0.0
    %340 = vmatpush1.msra.mxu0 0.0
    %341 = vmatprep.subr.mxu0 0.0
    %342 = vmatpush1.msra.mxu0 0.0
    %343 = vmatprep.subr.mxu0 0.0
    %344 = vmatpush1.msra.mxu0 0.0
    %345 = vmatprep.subr.mxu0 0.0
    %346 = vmatpush1.msra.mxu0 0.0
    %347 = vmatprep.subr.mxu0 0.0
    %348 = vmatpush1.msra.mxu0 0.0
    %349 = vmatprep.subr.mxu0 0.0
    %350 = vmatpush1.msra.mxu0 0.0
    %351 = vmatprep.subr.mxu0 0.0
    %352 = vmatpush1.msra.mxu0 0.0
    %353 = vmatprep.subr.mxu0 0.0
    %354 = vmatpush1.msra.mxu0 0.0
    %355 = vmatprep.subr.mxu0 0.0
    %356 = vmatpush1.msra.mxu0 0.0
    %357 = vmatprep.subr.mxu0 0.0
    %358 = vmatpush1.msra.mxu0 0.0
    %359 = vmatprep.subr.mxu0 0.0
    %360 = vmatpush1.msra.mxu0 0.0
    %361 = vmatprep.subr.mxu0 0.0
    %362 = vmatpush1.msra.mxu0 0.0
    %363 = vmatprep.subr.mxu0 0.0
    %364 = vmatpush1.msra.mxu0 0.0
    %365 = vmatprep.subr.mxu0 0.0
    %366 = vmatpush1.msra.mxu0 0.0
    %367 = vmatprep.subr.mxu0 0.0
    %368 = vmatpush1.msra.mxu0 %v335
    %369 = vmatprep.subr.mxu0 0.0
    %370 = vmatpush2.msra.mxu0 0.0
    %371 = vmatprep.subr.mxu0 0.0
    %372 = vmatpush2.msra.mxu0 0.0
    %373 = vmatprep.subr.mxu0 0.0
    %374 = vmatpush2.msra.mxu0 0.0
    %375 = vmatprep.subr.mxu0 0.0
    %376 = vmatpush2.msra.mxu0 0.0
    %377 = vmatprep.subr.mxu0 0.0
    %378 = vmatpush2.msra.mxu0 0.0
    %379 = vmatprep.subr.mxu0 0.0
    %380 = vmatpush2.msra.mxu0 0.0
    %381 = vmatprep.subr.mxu0 0.0
    %382 = vmatpush2.msra.mxu0 0.0
    %383 = vmatprep.subr.mxu0 0.0
    %384 = vmatpush2.msra.mxu0 0.0
    %385 = vmatprep.subr.mxu0 0.0
    %386 = vmatpush2.msra.mxu0 0.0
    %387 = vmatprep.subr.mxu0 0.0
    %388 = vmatpush2.msra.mxu0 0.0
    %389 = vmatprep.subr.mxu0 0.0
    %390 = vmatpush2.msra.mxu0 0.0
    %391 = vmatprep.subr.mxu0 0.0
    %392 = vmatpush2.msra.mxu0 0.0
    %393 = vmatprep.subr.mxu0 0.0
    %394 = vmatpush2.msra.mxu0 0.0
    %395 = vmatprep.subr.mxu0 0.0
    %396 = vmatpush2.msra.mxu0 0.0
    %397 = vmatprep.subr.mxu0 0.0
    %398 = vmatpush2.msra.mxu0 0.0
    %399 = vmatprep.subr.mxu0 0.0
    %400 = vmatpush2.msra.mxu0 0.0
    %401 = vmatprep.mubr.f32.mxu0 0.0
    %402 = vmatmul.mubr.f32.gmra.mxu0 %v332
    %v403 = vpop.f32.mrf.mxu0
    %v404 = vadd.f32 %v328, %v403
    %v405 = vpop.f32.mrf.mxu0
    %406 = vdwg.mxu0
    %v408 = vrot.slane %v404, 2
    %v410 = vadd.f32 %v404, %v408
    %v411 = vxor.u32 %v410, 2147483648
    %v412 = vmul.f32 %v411, 1.442695
    %v413 = vpow.pop %v412
    %v414 = vadd.f32 %v413, 1.0
    %v415 = vrcp.pop %v414
    %v416 = vmul.f32 1.0, %v415
    %v417 = vlaneseq
    %v418 = vshrl.u32 %v417, 7
    %v419 = vsub.s32 0, %v418
    %v420 = vrot.slane %v416, %v419
    %422 = vbcast.lane.b32.xlu0 %v420, 256
    %v423 = vpop.permute.xlu0 %422
    %s425 = sor.u32 256, 8
    %426 = vbcast.lane.b32.xlu0 %v420, %s425
    %v427 = vpop.permute.xlu0 %426
    %s429 = sor.u32 256, 16
    %430 = vbcast.lane.b32.xlu0 %v420, %s429
    %v431 = vpop.permute.xlu0 %430
    %s433 = sor.u32 256, 24
    %434 = vbcast.lane.b32.xlu0 %v420, %s433
    %v435 = vpop.permute.xlu0 %434
    %v436 = vlaneseq
    %v437 = vshrl.u32 %v436, 7
    %v438 = vsub.s32 1, %v437
    %v439 = vrot.slane %v416, %v438
    %441 = vbcast.lane.b32.xlu0 %v439, 256
    %v442 = vpop.permute.xlu0 %441
    %s444 = sor.u32 256, 8
    %445 = vbcast.lane.b32.xlu0 %v439, %s444
    %v446 = vpop.permute.xlu0 %445
    %s448 = sor.u32 256, 16
    %449 = vbcast.lane.b32.xlu0 %v439, %s448
    %v450 = vpop.permute.xlu0 %449
    %s452 = sor.u32 256, 24
    %453 = vbcast.lane.b32.xlu0 %v439, %s452
    %v454 = vpop.permute.xlu0 %453
    %v455 = vmul.f32 %v55, %v423
    %v456 = vmul.f32 %v56, %v423
    %v457 = vmul.f32 %v57, %v427
    %v458 = vmul.f32 %v58, %v427
    %v459 = vmul.f32 %v59, %v431
    %v460 = vmul.f32 %v60, %v431
    %v461 = vmul.f32 %v61, %v435
    %v462 = vmul.f32 %v62, %v435
    %v463 = vmul.f32 %v63, %v442
    %v464 = vmul.f32 %v64, %v442
    %v465 = vmul.f32 %v65, %v446
    %v466 = vmul.f32 %v66, %v446
    %v467 = vmul.f32 %v67, %v450
    %v468 = vmul.f32 %v68, %v450
    %v469 = vmul.f32 %v69, %v454
    %v470 = vmul.f32 %v70, %v454
    %v471 = vadd.f32 %v455, %v457
    %v472 = vadd.f32 %v471, %v459
    %v473 = vadd.f32 %v472, %v461
    %v474 = vrot.slane %v473, 4
    %v475 = vadd.f32 %v473, %v474
    %v476 = vrot.slane %v475, 2
    %v477 = vadd.f32 %v475, %v476
    %v478 = vrot.slane %v477, 1
    %v479 = vadd.f32 %v477, %v478
    %v480 = vadd.f32 %v456, %v458
    %v481 = vadd.f32 %v480, %v460
    %v482 = vadd.f32 %v481, %v462
    %v483 = vrot.slane %v482, 4
    %v484 = vadd.f32 %v482, %v483
    %v485 = vrot.slane %v484, 2
    %v486 = vadd.f32 %v484, %v485
    %v487 = vrot.slane %v486, 1
    %v488 = vadd.f32 %v486, %v487
    %v489 = vadd.f32 %v463, %v465
    %v490 = vadd.f32 %v489, %v467
    %v491 = vadd.f32 %v490, %v469
    %v492 = vrot.slane %v491, 4
    %v493 = vadd.f32 %v491, %v492
    %v494 = vrot.slane %v493, 2
    %v495 = vadd.f32 %v493, %v494
    %v496 = vrot.slane %v495, 1
    %v497 = vadd.f32 %v495, %v496
    %v498 = vadd.f32 %v464, %v466
    %v499 = vadd.f32 %v498, %v468
    %v500 = vadd.f32 %v499, %v470
    %v501 = vrot.slane %v500, 4
    %v502 = vadd.f32 %v500, %v501
    %v503 = vrot.slane %v502, 2
    %v504 = vadd.f32 %v502, %v503
    %v505 = vrot.slane %v504, 1
    %v506 = vadd.f32 %v504, %v505
    %v507 = vrcp.pop 32.0
    %v508 = vmul.f32 %v479, %v507
    %v509 = vmul.f32 %v488, %v507
    %v510 = vmul.f32 %v497, %v507
    %v511 = vmul.f32 %v506, %v507
    %v512 = vmax.f32 %v455, %v457
    %v513 = vmax.f32 %v512, %v459
    %v514 = vmax.f32 %v513, %v461
    %v515 = vrot.slane %v514, 4
    %v516 = vmax.f32 %v514, %v515
    %v517 = vrot.slane %v516, 2
    %v518 = vmax.f32 %v516, %v517
    %v519 = vrot.slane %v518, 1
    %v520 = vmax.f32 %v518, %v519
    %v521 = vmax.f32 %v456, %v458
    %v522 = vmax.f32 %v521, %v460
    %v523 = vmax.f32 %v522, %v462
    %v524 = vrot.slane %v523, 4
    %v525 = vmax.f32 %v523, %v524
    %v526 = vrot.slane %v525, 2
    %v527 = vmax.f32 %v525, %v526
    %v528 = vrot.slane %v527, 1
    %v529 = vmax.f32 %v527, %v528
    %v530 = vmax.f32 %v463, %v465
    %v531 = vmax.f32 %v530, %v467
    %v532 = vmax.f32 %v531, %v469
    %v533 = vrot.slane %v532, 4
    %v534 = vmax.f32 %v532, %v533
    %v535 = vrot.slane %v534, 2
    %v536 = vmax.f32 %v534, %v535
    %v537 = vrot.slane %v536, 1
    %v538 = vmax.f32 %v536, %v537
    %v539 = vmax.f32 %v464, %v466
    %v540 = vmax.f32 %v539, %v468
    %v541 = vmax.f32 %v540, %v470
    %v542 = vrot.slane %v541, 4
    %v543 = vmax.f32 %v541, %v542
    %v544 = vrot.slane %v543, 2
    %v545 = vmax.f32 %v543, %v544
    %v546 = vrot.slane %v545, 1
    %v547 = vmax.f32 %v545, %v546
    %v552 = vsel %vm182, %v510, %v508
    %v553 = vsel %vm182, %v511, %v509
    %v560 = vsel %vm182, %v538, %v520
    %v561 = vsel %vm182, %v547, %v529
    %v564 = vld [vmem:[#allocation5] sm:$0xff]
    %v565 = vld [vmem:[#allocation5 + $0x8] sm:$0xff]
    %v566 = vld [vmem:[#allocation5 + $0x10] sm:$0xff]
    %v567 = vld [vmem:[#allocation5 + $0x18] sm:$0xff]
    %v568 = vld [vmem:[#allocation5 + $0x20] sm:$0xff]
    %v569 = vld [vmem:[#allocation5 + $0x28] sm:$0xff]
    %v570 = vld [vmem:[#allocation5 + $0x30] sm:$0xff]
    %v571 = vld [vmem:[#allocation5 + $0x38] sm:$0xff]
    %v572 = vld [vmem:[#allocation5 + $0x40] sm:$0xff]
    %v573 = vld [vmem:[#allocation5 + $0x48] sm:$0xff]
    %v574 = vld [vmem:[#allocation5 + $0x50] sm:$0xff]
    %v575 = vld [vmem:[#allocation5 + $0x58] sm:$0xff]
    %v576 = vld [vmem:[#allocation5 + $0x60] sm:$0xff]
    %v577 = vld [vmem:[#allocation5 + $0x68] sm:$0xff]
    %v578 = vld [vmem:[#allocation5 + $0x70] sm:$0xff]
    %v579 = vld [vmem:[#allocation5 + $0x78] sm:$0xff]
    %v580 = vld [vmem:[#allocation5 + $0x80] sm:$0xff]
    %v581 = vld [vmem:[#allocation5 + $0x88] sm:$0xff]
    %v582 = vld [vmem:[#allocation5 + $0x90] sm:$0xff]
    %v583 = vld [vmem:[#allocation5 + $0x98] sm:$0xff]
    %v584 = vld [vmem:[#allocation5 + $0xa0] sm:$0xff]
    %v585 = vld [vmem:[#allocation5 + $0xa8] sm:$0xff]
    %v586 = vld [vmem:[#allocation5 + $0xb0] sm:$0xff]
    %v587 = vld [vmem:[#allocation5 + $0xb8] sm:$0xff]
    %v588 = vld [vmem:[#allocation5 + $0xc0] sm:$0xff]
    %v589 = vld [vmem:[#allocation5 + $0xc8] sm:$0xff]
    %v590 = vld [vmem:[#allocation5 + $0xd0] sm:$0xff]
    %v591 = vld [vmem:[#allocation5 + $0xd8] sm:$0xff]
    %v592 = vld [vmem:[#allocation5 + $0xe0] sm:$0xff]
    %v593 = vld [vmem:[#allocation5 + $0xe8] sm:$0xff]
    %v594 = vld [vmem:[#allocation5 + $0xf0] sm:$0xff]
    %v595 = vld [vmem:[#allocation5 + $0xf8] sm:$0xff]
    %v596 = vld [vmem:[#allocation5 + $0x100] sm:$0xff]
    %v597 = vld [vmem:[#allocation5 + $0x108] sm:$0xff]
    %v598 = vld [vmem:[#allocation5 + $0x110] sm:$0xff]
    %v599 = vld [vmem:[#allocation5 + $0x118] sm:$0xff]
    %v600 = vld [vmem:[#allocation5 + $0x120] sm:$0xff]
    %v601 = vld [vmem:[#allocation5 + $0x128] sm:$0xff]
    %v602 = vld [vmem:[#allocation5 + $0x130] sm:$0xff]
    %v603 = vld [vmem:[#allocation5 + $0x138] sm:$0xff]
    %v604 = vld [vmem:[#allocation5 + $0x140] sm:$0xff]
    %v605 = vld [vmem:[#allocation5 + $0x148] sm:$0xff]
    %v606 = vld [vmem:[#allocation5 + $0x150] sm:$0xff]
    %v607 = vld [vmem:[#allocation5 + $0x158] sm:$0xff]
    %v608 = vld [vmem:[#allocation5 + $0x160] sm:$0xff]
    %v609 = vld [vmem:[#allocation5 + $0x168] sm:$0xff]
    %v610 = vld [vmem:[#allocation5 + $0x170] sm:$0xff]
    %v611 = vld [vmem:[#allocation5 + $0x178] sm:$0xff]
    %v612 = vld [vmem:[#allocation5 + $0x180] sm:$0xff]
    %v613 = vld [vmem:[#allocation5 + $0x188] sm:$0xff]
    %v614 = vld [vmem:[#allocation5 + $0x190] sm:$0xff]
    %v615 = vld [vmem:[#allocation5 + $0x198] sm:$0xff]
    %v616 = vld [vmem:[#allocation5 + $0x1a0] sm:$0xff]
    %v617 = vld [vmem:[#allocation5 + $0x1a8] sm:$0xff]
    %v618 = vld [vmem:[#allocation5 + $0x1b0] sm:$0xff]
    %v619 = vld [vmem:[#allocation5 + $0x1b8] sm:$0xff]
    %v620 = vld [vmem:[#allocation5 + $0x1c0] sm:$0xff]
    %v621 = vld [vmem:[#allocation5 + $0x1c8] sm:$0xff]
    %v622 = vld [vmem:[#allocation5 + $0x1d0] sm:$0xff]
    %v623 = vld [vmem:[#allocation5 + $0x1d8] sm:$0xff]
    %v624 = vld [vmem:[#allocation5 + $0x1e0] sm:$0xff]
    %v625 = vld [vmem:[#allocation5 + $0x1e8] sm:$0xff]
    %v626 = vld [vmem:[#allocation5 + $0x1f0] sm:$0xff]
    %v627 = vld [vmem:[#allocation5 + $0x1f8] sm:$0xff]
    %v628 = vld [vmem:[#allocation5 + $0x200] sm:$0xff]
    %v629 = vld [vmem:[#allocation5 + $0x208] sm:$0xff]
    %v630 = vld [vmem:[#allocation5 + $0x210] sm:$0xff]
    %v631 = vld [vmem:[#allocation5 + $0x218] sm:$0xff]
    %v632 = vld [vmem:[#allocation5 + $0x220] sm:$0xff]
    %v633 = vld [vmem:[#allocation5 + $0x228] sm:$0xff]
    %v634 = vld [vmem:[#allocation5 + $0x230] sm:$0xff]
    %v635 = vld [vmem:[#allocation5 + $0x238] sm:$0xff]
    %v636 = vld [vmem:[#allocation5 + $0x240] sm:$0xff]
    %v637 = vld [vmem:[#allocation5 + $0x248] sm:$0xff]
    %v638 = vld [vmem:[#allocation5 + $0x250] sm:$0xff]
    %v639 = vld [vmem:[#allocation5 + $0x258] sm:$0xff]
    %v640 = vld [vmem:[#allocation5 + $0x260] sm:$0xff]
    %v641 = vld [vmem:[#allocation5 + $0x268] sm:$0xff]
    %v642 = vld [vmem:[#allocation5 + $0x270] sm:$0xff]
    %v643 = vld [vmem:[#allocation5 + $0x278] sm:$0xff]
    %v644 = vld [vmem:[#allocation5 + $0x280] sm:$0xff]
    %v645 = vld [vmem:[#allocation5 + $0x288] sm:$0xff]
    %v646 = vld [vmem:[#allocation5 + $0x290] sm:$0xff]
    %v647 = vld [vmem:[#allocation5 + $0x298] sm:$0xff]
    %v648 = vld [vmem:[#allocation5 + $0x2a0] sm:$0xff]
    %v649 = vld [vmem:[#allocation5 + $0x2a8] sm:$0xff]
    %v650 = vld [vmem:[#allocation5 + $0x2b0] sm:$0xff]
    %v651 = vld [vmem:[#allocation5 + $0x2b8] sm:$0xff]
    %v652 = vld [vmem:[#allocation5 + $0x2c0] sm:$0xff]
    %v653 = vld [vmem:[#allocation5 + $0x2c8] sm:$0xff]
    %v654 = vld [vmem:[#allocation5 + $0x2d0] sm:$0xff]
    %v655 = vld [vmem:[#allocation5 + $0x2d8] sm:$0xff]
    %v656 = vld [vmem:[#allocation5 + $0x2e0] sm:$0xff]
    %v657 = vld [vmem:[#allocation5 + $0x2e8] sm:$0xff]
    %v658 = vld [vmem:[#allocation5 + $0x2f0] sm:$0xff]
    %v659 = vld [vmem:[#allocation5 + $0x2f8] sm:$0xff]
    %v660 = vld [vmem:[#allocation5 + $0x300] sm:$0xff]
    %v661 = vld [vmem:[#allocation5 + $0x308] sm:$0xff]
    %v662 = vld [vmem:[#allocation5 + $0x310] sm:$0xff]
    %v663 = vld [vmem:[#allocation5 + $0x318] sm:$0xff]
    %v664 = vld [vmem:[#allocation5 + $0x320] sm:$0xff]
    %v665 = vld [vmem:[#allocation5 + $0x328] sm:$0xff]
    %v666 = vld [vmem:[#allocation5 + $0x330] sm:$0xff]
    %v667 = vld [vmem:[#allocation5 + $0x338] sm:$0xff]
    %v668 = vld [vmem:[#allocation5 + $0x340] sm:$0xff]
    %v669 = vld [vmem:[#allocation5 + $0x348] sm:$0xff]
    %v670 = vld [vmem:[#allocation5 + $0x350] sm:$0xff]
    %v671 = vld [vmem:[#allocation5 + $0x358] sm:$0xff]
    %v672 = vld [vmem:[#allocation5 + $0x360] sm:$0xff]
    %v673 = vld [vmem:[#allocation5 + $0x368] sm:$0xff]
    %v674 = vld [vmem:[#allocation5 + $0x370] sm:$0xff]
    %v675 = vld [vmem:[#allocation5 + $0x378] sm:$0xff]
    %v676 = vld [vmem:[#allocation5 + $0x380] sm:$0xff]
    %v677 = vld [vmem:[#allocation5 + $0x388] sm:$0xff]
    %v678 = vld [vmem:[#allocation5 + $0x390] sm:$0xff]
    %v679 = vld [vmem:[#allocation5 + $0x398] sm:$0xff]
    %v680 = vld [vmem:[#allocation5 + $0x3a0] sm:$0xff]
    %v681 = vld [vmem:[#allocation5 + $0x3a8] sm:$0xff]
    %v682 = vld [vmem:[#allocation5 + $0x3b0] sm:$0xff]
    %v683 = vld [vmem:[#allocation5 + $0x3b8] sm:$0xff]
    %v684 = vld [vmem:[#allocation5 + $0x3c0] sm:$0xff]
    %v685 = vld [vmem:[#allocation5 + $0x3c8] sm:$0xff]
    %v686 = vld [vmem:[#allocation5 + $0x3d0] sm:$0xff]
    %v687 = vld [vmem:[#allocation5 + $0x3d8] sm:$0xff]
    %v688 = vld [vmem:[#allocation5 + $0x3e0] sm:$0xff]
    %v689 = vld [vmem:[#allocation5 + $0x3e8] sm:$0xff]
    %v690 = vld [vmem:[#allocation5 + $0x3f0] sm:$0xff]
    %v691 = vld [vmem:[#allocation5 + $0x3f8] sm:$0xff]
    %v692 = vld [vmem:[%s6] sm:$0x3]
    %v694 = vlaneseq
    %v695 = vshrl.u32 %v694, 7
    %v696 = vsub.s32 0, %v695
    %v697 = vrot.slane %v692, %v696
    %v698 = vlaneseq
    %v699 = vshrl.u32 %v698, 7
    %v700 = vsub.s32 1, %v699
    %v701 = vrot.slane %v692, %v700
    %704 = vmatprep.subr.mxu0 %v595
    %705 = vmatpush1.msra.mxu0 %v594
    %706 = vmatprep.subr.mxu0 %v593
    %707 = vmatpush1.msra.mxu0 %v592
    %708 = vmatprep.subr.mxu0 %v591
    %709 = vmatpush1.msra.mxu0 %v590
    %710 = vmatprep.subr.mxu0 %v589
    %711 = vmatpush1.msra.mxu0 %v588
    %712 = vmatprep.subr.mxu0 %v587
    %713 = vmatpush1.msra.mxu0 %v586
    %714 = vmatprep.subr.mxu0 %v585
    %715 = vmatpush1.msra.mxu0 %v584
    %716 = vmatprep.subr.mxu0 %v583
    %717 = vmatpush1.msra.mxu0 %v582
    %718 = vmatprep.subr.mxu0 %v581
    %719 = vmatpush1.msra.mxu0 %v580
    %720 = vmatprep.subr.mxu0 %v579
    %721 = vmatpush1.msra.mxu0 %v578
    %722 = vmatprep.subr.mxu0 %v577
    %723 = vmatpush1.msra.mxu0 %v576
    %724 = vmatprep.subr.mxu0 %v575
    %725 = vmatpush1.msra.mxu0 %v574
    %726 = vmatprep.subr.mxu0 %v573
    %727 = vmatpush1.msra.mxu0 %v572
    %728 = vmatprep.subr.mxu0 %v571
    %729 = vmatpush1.msra.mxu0 %v570
    %730 = vmatprep.subr.mxu0 %v569
    %731 = vmatpush1.msra.mxu0 %v568
    %732 = vmatprep.subr.mxu0 %v567
    %733 = vmatpush1.msra.mxu0 %v566
    %734 = vmatprep.subr.mxu0 %v565
    %735 = vmatpush1.msra.mxu0 %v564
    %736 = vmatprep.subr.mxu0 %v627
    %737 = vmatpush2.msra.mxu0 %v626
    %738 = vmatprep.subr.mxu0 %v625
    %739 = vmatpush2.msra.mxu0 %v624
    %740 = vmatprep.subr.mxu0 %v623
    %741 = vmatpush2.msra.mxu0 %v622
    %742 = vmatprep.subr.mxu0 %v621
    %743 = vmatpush2.msra.mxu0 %v620
    %744 = vmatprep.subr.mxu0 %v619
    %745 = vmatpush2.msra.mxu0 %v618
    %746 = vmatprep.subr.mxu0 %v617
    %747 = vmatpush2.msra.mxu0 %v616
    %748 = vmatprep.subr.mxu0 %v615
    %749 = vmatpush2.msra.mxu0 %v614
    %750 = vmatprep.subr.mxu0 %v613
    %751 = vmatpush2.msra.mxu0 %v612
    %752 = vmatprep.subr.mxu0 %v611
    %753 = vmatpush2.msra.mxu0 %v610
    %754 = vmatprep.subr.mxu0 %v609
    %755 = vmatpush2.msra.mxu0 %v608
    %756 = vmatprep.subr.mxu0 %v607
    %757 = vmatpush2.msra.mxu0 %v606
    %758 = vmatprep.subr.mxu0 %v605
    %759 = vmatpush2.msra.mxu0 %v604
    %760 = vmatprep.subr.mxu0 %v603
    %761 = vmatpush2.msra.mxu0 %v602
    %762 = vmatprep.subr.mxu0 %v601
    %763 = vmatpush2.msra.mxu0 %v600
    %764 = vmatprep.subr.mxu0 %v599
    %765 = vmatpush2.msra.mxu0 %v598
    %766 = vmatprep.subr.mxu0 %v597
    %767 = vmatpush2.msra.mxu0 %v596
    %768 = vmatprep.mubr.f32.mxu0 %v553
    %769 = vmatmul.mubr.f32.gmra.mxu0 %v552
    %v770 = vpop.f32.mrf.mxu0
    %v771 = vadd.f32 %v697, %v770
    %v772 = vpop.f32.mrf.mxu0
    %v773 = vadd.f32 %v701, %v772
    %774 = vdwg.mxu0
    %775 = vmatprep.subr.mxu0 %v659
    %776 = vmatpush1.msra.mxu0 %v658
    %777 = vmatprep.subr.mxu0 %v657
    %778 = vmatpush1.msra.mxu0 %v656
    %779 = vmatprep.subr.mxu0 %v655
    %780 = vmatpush1.msra.mxu0 %v654
    %781 = vmatprep.subr.mxu0 %v653
    %782 = vmatpush1.msra.mxu0 %v652
    %783 = vmatprep.subr.mxu0 %v651
    %784 = vmatpush1.msra.mxu0 %v650
    %785 = vmatprep.subr.mxu0 %v649
    %786 = vmatpush1.msra.mxu0 %v648
    %787 = vmatprep.subr.mxu0 %v647
    %788 = vmatpush1.msra.mxu0 %v646
    %789 = vmatprep.subr.mxu0 %v645
    %790 = vmatpush1.msra.mxu0 %v644
    %791 = vmatprep.subr.mxu0 %v643
    %792 = vmatpush1.msra.mxu0 %v642
    %793 = vmatprep.subr.mxu0 %v641
    %794 = vmatpush1.msra.mxu0 %v640
    %795 = vmatprep.subr.mxu0 %v639
    %796 = vmatpush1.msra.mxu0 %v638
    %797 = vmatprep.subr.mxu0 %v637
    %798 = vmatpush1.msra.mxu0 %v636
    %799 = vmatprep.subr.mxu0 %v635
    %800 = vmatpush1.msra.mxu0 %v634
    %801 = vmatprep.subr.mxu0 %v633
    %802 = vmatpush1.msra.mxu0 %v632
    %803 = vmatprep.subr.mxu0 %v631
    %804 = vmatpush1.msra.mxu0 %v630
    %805 = vmatprep.subr.mxu0 %v629
    %806 = vmatpush1.msra.mxu0 %v628
    %807 = vmatprep.subr.mxu0 %v691
    %808 = vmatpush2.msra.mxu0 %v690
    %809 = vmatprep.subr.mxu0 %v689
    %810 = vmatpush2.msra.mxu0 %v688
    %811 = vmatprep.subr.mxu0 %v687
    %812 = vmatpush2.msra.mxu0 %v686
    %813 = vmatprep.subr.mxu0 %v685
    %814 = vmatpush2.msra.mxu0 %v684
    %815 = vmatprep.subr.mxu0 %v683
    %816 = vmatpush2.msra.mxu0 %v682
    %817 = vmatprep.subr.mxu0 %v681
    %818 = vmatpush2.msra.mxu0 %v680
    %819 = vmatprep.subr.mxu0 %v679
    %820 = vmatpush2.msra.mxu0 %v678
    %821 = vmatprep.subr.mxu0 %v677
    %822 = vmatpush2.msra.mxu0 %v676
    %823 = vmatprep.subr.mxu0 %v675
    %824 = vmatpush2.msra.mxu0 %v674
    %825 = vmatprep.subr.mxu0 %v673
    %826 = vmatpush2.msra.mxu0 %v672
    %827 = vmatprep.subr.mxu0 %v671
    %828 = vmatpush2.msra.mxu0 %v670
    %829 = vmatprep.subr.mxu0 %v669
    %830 = vmatpush2.msra.mxu0 %v668
    %831 = vmatprep.subr.mxu0 %v667
    %832 = vmatpush2.msra.mxu0 %v666
    %833 = vmatprep.subr.mxu0 %v665
    %834 = vmatpush2.msra.mxu0 %v664
    %835 = vmatprep.subr.mxu0 %v663
    %836 = vmatpush2.msra.mxu0 %v662
    %837 = vmatprep.subr.mxu0 %v661
    %838 = vmatpush2.msra.mxu0 %v660
    %839 = vmatprep.mubr.f32.mxu0 %v561
    %840 = vmatmul.mubr.f32.gmra.mxu0 %v560
    %v841 = vpop.f32.mrf.mxu0
    %v842 = vadd.f32 %v771, %v841
    %v843 = vpop.f32.mrf.mxu0
    %v844 = vadd.f32 %v773, %v843
    %845 = vdwg.mxu0
    %v846 = vxor.u32 %v842, 2147483648
    %v847 = vxor.u32 %v844, 2147483648
    %v848 = vmul.f32 %v846, 1.442695
    %v849 = vpow.pop %v848
    %v850 = vmul.f32 %v847, 1.442695
    %v851 = vpow.pop %v850
    %v852 = vadd.f32 %v849, 1.0
    %v853 = vadd.f32 %v851, 1.0
    %v854 = vrcp.pop %v852
    %v855 = vmul.f32 1.0, %v854
    %v856 = vrcp.pop %v853
    %v857 = vmul.f32 1.0, %v856
    %v860 = vcombine.low %v855, %v857
    %v862 = vunpack.c.l.s4 1966171168
    %v863 = vunpack.c.0.s8 %v862
    %v864 = vlaneseq
    %v865 = vshrl.u32 %v864, 7
    %v866 = vsub.s32 %v863, %v865
    %v867 = vrot.slane %v860, %v866
    %v868 = vcombine.high %v867, %v867
    %v870 = vunpack.c.l.s4 1966171168
    %v871 = vunpack.c.0.s8 %v870
    %v872 = vlaneseq
    %v873 = vshrl.u32 %v872, 7
    %v874 = vsub.s32 %v871, %v873
    %v875 = vrot.slane %v867, %v874
    %v877 = vunpack.c.l.s4 1966171168
    %v878 = vunpack.c.0.s8 %v877
    %v879 = vlaneseq
    %v880 = vshrl.u32 %v879, 7
    %v881 = vsub.s32 %v878, %v880
    %v882 = vrot.slane %v868, %v881
    %v883 = vlaneseq
    %v884 = vshrl.u32 %v883, 7
    %v885 = vsub.s32 0, %v884
    %v886 = vrot.slane %v875, %v885
    %v887 = vlaneseq
    %v888 = vshrl.u32 %v887, 7
    %v889 = vsub.s32 1, %v888
    %v890 = vrot.slane %v875, %v889
    %v891 = vlaneseq
    %v892 = vshrl.u32 %v891, 7
    %v893 = vsub.s32 0, %v892
    %v894 = vrot.slane %v882, %v893
    %v895 = vlaneseq
    %v896 = vshrl.u32 %v895, 7
    %v897 = vsub.s32 1, %v896
    %v898 = vrot.slane %v882, %v897
    %v903 = vmul.f32 %v455, %v886
    %v904 = vmul.f32 %v456, %v890
    %v905 = vmul.f32 %v457, %v886
    %v906 = vmul.f32 %v458, %v890
    %v907 = vmul.f32 %v459, %v886
    %v908 = vmul.f32 %v460, %v890
    %v909 = vmul.f32 %v461, %v886
    %v910 = vmul.f32 %v462, %v890
    %v911 = vmul.f32 %v463, %v894
    %v912 = vmul.f32 %v464, %v898
    %v913 = vmul.f32 %v465, %v894
    %v914 = vmul.f32 %v466, %v898
    %v915 = vmul.f32 %v467, %v894
    %v916 = vmul.f32 %v468, %v898
    %v917 = vmul.f32 %v469, %v894
    %v918 = vmul.f32 %v470, %v898
    %919 = vst [vmem:[#allocation7] sm:$0xff] %v903
    %920 = vst [vmem:[#allocation7 + $0x8] sm:$0xff] %v904
    %921 = vst [vmem:[#allocation7 + $0x10] sm:$0xff] %v905
    %922 = vst [vmem:[#allocation7 + $0x18] sm:$0xff] %v906
    %923 = vst [vmem:[#allocation7 + $0x20] sm:$0xff] %v907
    %924 = vst [vmem:[#allocation7 + $0x28] sm:$0xff] %v908
    %925 = vst [vmem:[#allocation7 + $0x30] sm:$0xff] %v909
    %926 = vst [vmem:[#allocation7 + $0x38] sm:$0xff] %v910
    %927 = vst [vmem:[#allocation7 + $0x40] sm:$0xff] %v911
    %928 = vst [vmem:[#allocation7 + $0x48] sm:$0xff] %v912
    %929 = vst [vmem:[#allocation7 + $0x50] sm:$0xff] %v913
    %930 = vst [vmem:[#allocation7 + $0x58] sm:$0xff] %v914
    %931 = vst [vmem:[#allocation7 + $0x60] sm:$0xff] %v915
    %932 = vst [vmem:[#allocation7 + $0x68] sm:$0xff] %v916
    %933 = vst [vmem:[#allocation7 + $0x70] sm:$0xff] %v917
    %934 = vst [vmem:[#allocation7 + $0x78] sm:$0xff] %v918
    // Predicated region
    $region38: #{tpu_custom_call.1} parent=1 // pred_check
      _
    $region39: #{tpu_custom_call.1} parent=1 // pred_check_branch
      %936 = sbr.rel (0) target = $region41
    $region40: #{tpu_custom_call.1} parent=1 // pred_region
      %s938 = ssub.s32 2048, 2048
      %939 = vsyncadd [#allocation4], %s938
      %s940 = sshll.u32 [#allocation7], 4
      %s941 = int_to_ptr.vmem [resolvable:$true] %s940
      %946 = dma.vmem_to_hbm [thread:$0]  %s941, 2048, %s7, [#allocation4], 256, 256, 16
    $region41: #{tpu_custom_call.1} parent=1 // pred_fallthru
      _
    // Predicated region
    $region42: #{tpu_custom_call.1} parent=1 // pred_check
      _
    $region43: #{tpu_custom_call.1} parent=1 // pred_check_branch
      %948 = sbr.rel (0) target = $region45
    $region44: #{tpu_custom_call.1} parent=1 // pred_region
      %949 = dma.done [#allocation4], 2048
    $region45: #{tpu_custom_call.1} parent=1 // pred_fallthru
      _
    %950 = vsyncpa [#allocation3], 1
    %951 = vsyncpa [#allocation6], 1
    %952 = vsyncpa [#allocation4], 1

// kernel: tpu_custom_call.1
$region0: #{tpu_custom_call.1}
  #allocation0 [shape = 'u32[]', space=smem, size = 0x4, offset = 0x4, fixed_abs, tag = 'smem constant byte address 0x4 - core index']
  #allocation1 [shape = 'u32[144,128]{1,0:T(1,128)}', space=vmem, size = 0x12000, scoped, tag = 'internal scratch']
  %s0 = inlined_call_operand.hbm [shape: f32[2,32,256], index: 0, kind: input, shape index: {}]
  %s1 = inlined_call_operand.vmem [shape: f32[32,2], index: 1, kind: input, shape index: {}]
  %s2 = inlined_call_operand.vmem [shape: f32[1,2], index: 2, kind: input, shape index: {}]
  %s3 = inlined_call_operand.vmem [shape: f32[2,32], index: 3, kind: input, shape index: {}]
  %s4 = inlined_call_operand.vmem [shape: f32[1,32], index: 4, kind: input, shape index: {}]
  %s5 = inlined_call_operand.hbm [shape: f32[512,256], index: 5, kind: input, shape index: {}]
  %s6 = inlined_call_operand.vmem [shape: f32[1,256], index: 6, kind: input, shape index: {}]
  %s7 = inlined_call_operand.hbm [shape: f32[2,32,256], index: 7, kind: output, shape index: {}]
  %s8 = sld [smem:[#allocation0]]
  $region46: #{tpu_custom_call.1} parent=0
    _
  %s10 = ssub.s32 1, %s8
  %s11 = scalar_select 0, %s10, %s8
  $region1: #{tpu_custom_call.1} parent=0
    #allocation2 [shape = 'u8[65536]{0}', space=vmem, size = 0x10000, scoped, tag = 'input window, operand 0, single buffered']
    #allocation3 [shape = 's32[1]{0}', space=sflag, size = 0x4, scoped, tag = 'scoped memory for tpu_custom_call.1']
    #allocation4 [shape = 's32[1]{0}', space=sflag, size = 0x4, scoped, tag = 'scoped memory for tpu_custom_call.1']
    #allocation5 [shape = 'u8[524288]{0}', space=vmem, size = 0x80000, scoped, tag = 'input window, operand 5, single buffered']
    #allocation6 [shape = 's32[1]{0}', space=sflag, size = 0x4, scoped, tag = 'scoped memory for tpu_custom_call.1']
    #allocation7 [shape = 'u8[65536]{0}', space=vmem, size = 0x10000, scoped, tag = 'output window, operand 0, single buffered']
    %12 = vsyncpa [#allocation3], 0
    %13 = vsyncpa [#allocation6], 0
    %14 = vsyncpa [#allocation4], 0
    // Predicated region
    $region2: #{tpu_custom_call.1} parent=1 // pred_check
      _
    $region3: #{tpu_custom_call.1} parent=1 // pred_check_branch
      %16 = sbr.rel (0) target = $region5
    $region4: #{tpu_custom_call.1} parent=1 // pred_region
      %s18 = ssub.s32 2048, 2048
      %19 = vsyncadd [#allocation3], %s18
      %s20 = sshll.u32 [#allocation2], 4
      %s21 = int_to_ptr.vmem [resolvable:$true] %s20
      %26 = dma.hbm_to_vmem [thread:$0]  %s0, 2048, %s21, [#allocation3], 256, 256, 16
    $region5: #{tpu_custom_call.1} parent=1 // pred_fallthru
      _
    // Predicated region
    $region6: #{tpu_custom_call.1} parent=1 // pred_check
      _
    $region7: #{tpu_custom_call.1} parent=1 // pred_check_branch
      %28 = sbr.rel (0) target = $region9
    $region8: #{tpu_custom_call.1} parent=1 // pred_region
      _
    $region9: #{tpu_custom_call.1} parent=1 // pred_fallthru
      _
    // Predicated region
    $region10: #{tpu_custom_call.1} parent=1 // pred_check
      _
    $region11: #{tpu_custom_call.1} parent=1 // pred_check_branch
      %30 = sbr.rel (0) target = $region13
    $region12: #{tpu_custom_call.1} parent=1 // pred_region
      _
    $region13: #{tpu_custom_call.1} parent=1 // pred_fallthru
      _
    // Predicated region
    $region14: #{tpu_custom_call.1} parent=1 // pred_check
      _
    $region15: #{tpu_custom_call.1} parent=1 // pred_check_branch
      %32 = sbr.rel (0) target = $region17
    $region16: #{tpu_custom_call.1} parent=1 // pred_region
      _
    $region17: #{tpu_custom_call.1} parent=1 // pred_fallthru
      _
    // Predicated region
    $region18: #{tpu_custom_call.1} parent=1 // pred_check
      _
    $region19: #{tpu_custom_call.1} parent=1 // pred_check_branch
      %34 = sbr.rel (0) target = $region21
    $region20: #{tpu_custom_call.1} parent=1 // pred_region
      _
    $region21: #{tpu_custom_call.1} parent=1 // pred_fallthru
      _
    // Predicated region
    $region22: #{tpu_custom_call.1} parent=1 // pred_check
      _
    $region23: #{tpu_custom_call.1} parent=1 // pred_check_branch
      %36 = sbr.rel (0) target = $region25
    $region24: #{tpu_custom_call.1} parent=1 // pred_region
      %s38 = ssub.s32 16384, 16384
      %39 = vsyncadd [#allocation6], %s38
      %s40 = sshll.u32 [#allocation5], 4
      %s41 = int_to_ptr.vmem [resolvable:$true] %s40
      %46 = dma.hbm_to_vmem [thread:$0]  %s5, 16384, %s41, [#allocation6], 256, 256, 16
    $region25: #{tpu_custom_call.1} parent=1 // pred_fallthru
      _
    // Predicated region
    $region26: #{tpu_custom_call.1} parent=1 // pred_check
      _
    $region27: #{tpu_custom_call.1} parent=1 // pred_check_branch
      %48 = sbr.rel (0) target = $region29
    $region28: #{tpu_custom_call.1} parent=1 // pred_region
      _
    $region29: #{tpu_custom_call.1} parent=1 // pred_fallthru
      _
    // Predicated region
    $region30: #{tpu_custom_call.1} parent=1 // pred_check
      _
    $region31: #{tpu_custom_call.1} parent=1 // pred_check_branch
      %50 = sbr.rel (0) target = $region33
    $region32: #{tpu_custom_call.1} parent=1 // pred_region
      %51 = dma.done [#allocation3], 2048
    $region33: #{tpu_custom_call.1} parent=1 // pred_fallthru
      _
    // Predicated region
    $region34: #{tpu_custom_call.1} parent=1 // pred_check
      _
    $region35: #{tpu_custom_call.1} parent=1 // pred_check_branch
      %53 = sbr.rel (0) target = $region37
    $region36: #{tpu_custom_call.1} parent=1 // pred_region
      %54 = dma.done [#allocation6], 16384
    $region37: #{tpu_custom_call.1} parent=1 // pred_fallthru
      _
    %v55 = vld [vmem:[#allocation2] sm:$0xff]
    %v56 = vld [vmem:[#allocation2 + $0x8] sm:$0xff]
    %v57 = vld [vmem:[#allocation2 + $0x10] sm:$0xff]
    %v58 = vld [vmem:[#allocation2 + $0x18] sm:$0xff]
    %v59 = vld [vmem:[#allocation2 + $0x20] sm:$0xff]
    %v60 = vld [vmem:[#allocation2 + $0x28] sm:$0xff]
    %v61 = vld [vmem:[#allocation2 + $0x30] sm:$0xff]
    %v62 = vld [vmem:[#allocation2 + $0x38] sm:$0xff]
    %v63 = vld [vmem:[#allocation2 + $0x40] sm:$0xff]
    %v64 = vld [vmem:[#allocation2 + $0x48] sm:$0xff]
    %v65 = vld [vmem:[#allocation2 + $0x50] sm:$0xff]
    %v66 = vld [vmem:[#allocation2 + $0x58] sm:$0xff]
    %v67 = vld [vmem:[#allocation2 + $0x60] sm:$0xff]
    %v68 = vld [vmem:[#allocation2 + $0x68] sm:$0xff]
    %v69 = vld [vmem:[#allocation2 + $0x70] sm:$0xff]
    %v70 = vld [vmem:[#allocation2 + $0x78] sm:$0xff]
    %v71 = vadd.f32 %v55, %v56
    %72 = vadd.xlane.f32.xlu0 %v71
    %v73 = vpop.xlane.xlu0 %72
    %v74 = vadd.f32 %v57, %v58
    %75 = vadd.xlane.f32.xlu0 %v74
    %v76 = vpop.xlane.xlu0 %75
    %v77 = vadd.f32 %v59, %v60
    %78 = vadd.xlane.f32.xlu0 %v77
    %v79 = vpop.xlane.xlu0 %78
    %v80 = vadd.f32 %v61, %v62
    %81 = vadd.xlane.f32.xlu0 %v80
    %v82 = vpop.xlane.xlu0 %81
    %v83 = vadd.f32 %v63, %v64
    %84 = vadd.xlane.f32.xlu0 %v83
    %v85 = vpop.xlane.xlu0 %84
    %v86 = vadd.f32 %v65, %v66
    %87 = vadd.xlane.f32.xlu0 %v86
    %v88 = vpop.xlane.xlu0 %87
    %v89 = vadd.f32 %v67, %v68
    %90 = vadd.xlane.f32.xlu0 %v89
    %v91 = vpop.xlane.xlu0 %90
    %v92 = vadd.f32 %v69, %v70
    %93 = vadd.xlane.f32.xlu0 %v92
    %v94 = vpop.xlane.xlu0 %93
    %v95 = vrcp.pop 256.0
    %v96 = vmul.f32 %v73, %v95
    %v97 = vmul.f32 %v76, %v95
    %v98 = vmul.f32 %v79, %v95
    %v99 = vmul.f32 %v82, %v95
    %v100 = vmul.f32 %v85, %v95
    %v101 = vmul.f32 %v88, %v95
    %v102 = vmul.f32 %v91, %v95
    %v103 = vmul.f32 %v94, %v95
    %v104 = vmax.f32 %v55, %v56
    %105 = vmax.xlane.f32.xlu0 %v104
    %v106 = vpop.xlane.xlu0 %105
    %v107 = vmax.f32 %v57, %v58
    %108 = vmax.xlane.f32.xlu0 %v107
    %v109 = vpop.xlane.xlu0 %108
    %v110 = vmax.f32 %v59, %v60
    %111 = vmax.xlane.f32.xlu0 %v110
    %v112 = vpop.xlane.xlu0 %111
    %v113 = vmax.f32 %v61, %v62
    %114 = vmax.xlane.f32.xlu0 %v113
    %v115 = vpop.xlane.xlu0 %114
    %v116 = vmax.f32 %v63, %v64
    %117 = vmax.xlane.f32.xlu0 %v116
    %v118 = vpop.xlane.xlu0 %117
    %v119 = vmax.f32 %v65, %v66
    %120 = vmax.xlane.f32.xlu0 %v119
    %v121 = vpop.xlane.xlu0 %120
    %v122 = vmax.f32 %v67, %v68
    %123 = vmax.xlane.f32.xlu0 %v122
    %v124 = vpop.xlane.xlu0 %123
    %v125 = vmax.f32 %v69, %v70
    %126 = vmax.xlane.f32.xlu0 %v125
    %v127 = vpop.xlane.xlu0 %126
    %v136 = vlaneseq
    %v137 = vand.u32 %v136, 127
    %v138 = vlaneseq
    %v139 = vshrl.u32 %v138, 7
    %v140 = vsub.s32 %v137, %v139
    %v141 = vrot.slane %v96, %v140
    %v142 = vadd.s32 %v137, 4294967288
    %v143 = vlaneseq
    %v144 = vshrl.u32 %v143, 7
    %v145 = vsub.s32 %v142, %v144
    %v146 = vrot.slane %v97, %v145
    %vm147 = vcmask 130112
    %v148 = vsel %vm147, %v146, %v141
    %v149 = vadd.s32 %v137, 4294967280
    %v150 = vlaneseq
    %v151 = vshrl.u32 %v150, 7
    %v152 = vsub.s32 %v149, %v151
    %v153 = vrot.slane %v98, %v152
    %vm154 = vcmask 195712
    %v155 = vsel %vm154, %v153, %v148
    %v156 = vadd.s32 %v137, 4294967272
    %v157 = vlaneseq
    %v158 = vshrl.u32 %v157, 7
    %v159 = vsub.s32 %v156, %v158
    %v160 = vrot.slane %v99, %v159
    %vm161 = vcmask 261312
    %v162 = vsel %vm161, %v160, %v155
    %v163 = vlaneseq
    %v164 = vshrl.u32 %v163, 7
    %v165 = vsub.s32 %v137, %v164
    %v166 = vrot.slane %v100, %v165
    %v167 = vlaneseq
    %v168 = vshrl.u32 %v167, 7
    %v169 = vsub.s32 %v142, %v168
    %v170 = vrot.slane %v101, %v169
    %v171 = vsel %vm147, %v170, %v166
    %v172 = vlaneseq
    %v173 = vshrl.u32 %v172, 7
    %v174 = vsub.s32 %v149, %v173
    %v175 = vrot.slane %v102, %v174
    %v176 = vsel %vm154, %v175, %v171
    %v177 = vlaneseq
    %v178 = vshrl.u32 %v177, 7
    %v179 = vsub.s32 %v156, %v178
    %v180 = vrot.slane %v103, %v179
    %v181 = vsel %vm161, %v180, %v176
    %vm182 = vcmask 1041409
    %v183 = vsel %vm182, %v181, %v162
    %v193 = vlaneseq
    %v194 = vshrl.u32 %v193, 7
    %v195 = vsub.s32 %v137, %v194
    %v196 = vrot.slane %v106, %v195
    %v197 = vlaneseq
    %v198 = vshrl.u32 %v197, 7
    %v199 = vsub.s32 %v142, %v198
    %v200 = vrot.slane %v109, %v199
    %v201 = vsel %vm147, %v200, %v196
    %v202 = vlaneseq
    %v203 = vshrl.u32 %v202, 7
    %v204 = vsub.s32 %v149, %v203
    %v205 = vrot.slane %v112, %v204
    %v206 = vsel %vm154, %v205, %v201
    %v207 = vlaneseq
    %v208 = vshrl.u32 %v207, 7
    %v209 = vsub.s32 %v156, %v208
    %v210 = vrot.slane %v115, %v209
    %v211 = vsel %vm161, %v210, %v206
    %v212 = vlaneseq
    %v213 = vshrl.u32 %v212, 7
    %v214 = vsub.s32 %v137, %v213
    %v215 = vrot.slane %v118, %v214
    %v216 = vlaneseq
    %v217 = vshrl.u32 %v216, 7
    %v218 = vsub.s32 %v142, %v217
    %v219 = vrot.slane %v121, %v218
    %v220 = vsel %vm147, %v219, %v215
    %v221 = vlaneseq
    %v222 = vshrl.u32 %v221, 7
    %v223 = vsub.s32 %v149, %v222
    %v224 = vrot.slane %v124, %v223
    %v225 = vsel %vm154, %v224, %v220
    %v226 = vlaneseq
    %v227 = vshrl.u32 %v226, 7
    %v228 = vsub.s32 %v156, %v227
    %v229 = vrot.slane %v127, %v228
    %v230 = vsel %vm161, %v229, %v225
    %vm231 = vcmask 1043459
    %v232 = vsel %vm231, %v230, %v211
    %vm234 = vcmask 1041408
    %v235 = vsel %vm234, %v183, %v232
    %v236 = vld [vmem:[%s1] sm:$0xff]
    %v237 = vld [vmem:[%s1 + $0x8] sm:$0xff]
    %v238 = vld [vmem:[%s1 + $0x10] sm:$0xff]
    %v239 = vld [vmem:[%s1 + $0x18] sm:$0xff]
    %v240 = vld [vmem:[%s2] sm:$0x1]
    %v242 = vlaneseq
    %v243 = vshrl.u32 %v242, 7
    %v244 = vsub.s32 0, %v243
    %v245 = vrot.slane %v240, %v244
    %vm247 = vcmask 261120
    %v249 = vsel %vm247, %v235, 0
    %251 = vmatprep.subr.mxu0 0.0
    %252 = vmatpush1.msra.mxu0 0.0
    %253 = vmatprep.subr.mxu0 0.0
    %254 = vmatpush1.msra.mxu0 0.0
    %255 = vmatprep.subr.mxu0 0.0
    %256 = vmatpush1.msra.mxu0 0.0
    %257 = vmatprep.subr.mxu0 0.0
    %258 = vmatpush1.msra.mxu0 0.0
    %259 = vmatprep.subr.mxu0 0.0
    %260 = vmatpush1.msra.mxu0 0.0
    %261 = vmatprep.subr.mxu0 0.0
    %262 = vmatpush1.msra.mxu0 0.0
    %263 = vmatprep.subr.mxu0 0.0
    %264 = vmatpush1.msra.mxu0 0.0
    %265 = vmatprep.subr.mxu0 0.0
    %266 = vmatpush1.msra.mxu0 0.0
    %267 = vmatprep.subr.mxu0 0.0
    %268 = vmatpush1.msra.mxu0 0.0
    %269 = vmatprep.subr.mxu0 0.0
    %270 = vmatpush1.msra.mxu0 0.0
    %271 = vmatprep.subr.mxu0 0.0
    %272 = vmatpush1.msra.mxu0 0.0
    %273 = vmatprep.subr.mxu0 0.0
    %274 = vmatpush1.msra.mxu0 0.0
    %275 = vmatprep.subr.mxu0 0.0
    %276 = vmatpush1.msra.mxu0 %v239
    %277 = vmatprep.subr.mxu0 0.0
    %278 = vmatpush1.msra.mxu0 %v238
    %279 = vmatprep.subr.mxu0 0.0
    %280 = vmatpush1.msra.mxu0 %v237
    %281 = vmatprep.subr.mxu0 0.0
    %282 = vmatpush1.msra.mxu0 %v236
    %283 = vmatprep.subr.mxu0 0.0
    %284 = vmatpush2.msra.mxu0 0.0
    %285 = vmatprep.subr.mxu0 0.0
    %286 = vmatpush2.msra.mxu0 0.0
    %287 = vmatprep.subr.mxu0 0.0
    %288 = vmatpush2.msra.mxu0 0.0
    %289 = vmatprep.subr.mxu0 0.0
    %290 = vmatpush2.msra.mxu0 0.0
    %291 = vmatprep.subr.mxu0 0.0
    %292 = vmatpush2.msra.mxu0 0.0
    %293 = vmatprep.subr.mxu0 0.0
    %294 = vmatpush2.msra.mxu0 0.0
    %295 = vmatprep.subr.mxu0 0.0
    %296 = vmatpush2.msra.mxu0 0.0
    %297 = vmatprep.subr.mxu0 0.0
    %298 = vmatpush2.msra.mxu0 0.0
    %299 = vmatprep.subr.mxu0 0.0
    %300 = vmatpush2.msra.mxu0 0.0
    %301 = vmatprep.subr.mxu0 0.0
    %302 = vmatpush2.msra.mxu0 0.0
    %303 = vmatprep.subr.mxu0 0.0
    %304 = vmatpush2.msra.mxu0 0.0
    %305 = vmatprep.subr.mxu0 0.0
    %306 = vmatpush2.msra.mxu0 0.0
    %307 = vmatprep.subr.mxu0 0.0
    %308 = vmatpush2.msra.mxu0 0.0
    %309 = vmatprep.subr.mxu0 0.0
    %310 = vmatpush2.msra.mxu0 0.0
    %311 = vmatprep.subr.mxu0 0.0
    %312 = vmatpush2.msra.mxu0 0.0
    %313 = vmatprep.subr.mxu0 0.0
    %314 = vmatpush2.msra.mxu0 0.0
    %315 = vmatprep.mubr.f32.mxu0 0.0
    %316 = vmatmul.mubr.f32.gmra.mxu0 %v249
    %v317 = vpop.f32.mrf.mxu0
    %v318 = vadd.f32 %v245, %v317
    %v319 = vpop.f32.mrf.mxu0
    %320 = vdwg.mxu0
    %v321 = vmax.f32 %v318, 0.0
    %v322 = vld [vmem:[%s3] sm:$0x3]
    %v323 = vld [vmem:[%s4] sm:$0x1]
    %v325 = vlaneseq
    %v326 = vshrl.u32 %v325, 7
    %v327 = vsub.s32 0, %v326
    %v328 = vrot.slane %v323, %v327
    %vm330 = vcmask 15360
    %v332 = vsel %vm330, %v321, 0
    %v335 = vsel %vm234, %v322, 0
    %337 = vmatprep.subr.mxu0 0.0
    %338 = vmatpush1.msra.mxu0 0.0
    %339 = vmatprep.subr.mxu0 0.0
    %340 = vmatpush1.msra.mxu0 0.0
    %341 = vmatprep.subr.mxu0 0.0
    %342 = vmatpush1.msra.mxu0 0.0
    %343 = vmatprep.subr.mxu0 0.0
    %344 = vmatpush1.msra.mxu0 0.0
    %345 = vmatprep.subr.mxu0 0.0
    %346 = vmatpush1.msra.mxu0 0.0
    %347 = vmatprep.subr.mxu0 0.0
    %348 = vmatpush1.msra.mxu0 0.0
    %349 = vmatprep.subr.mxu0 0.0
    %350 = vmatpush1.msra.mxu0 0.0
    %351 = vmatprep.subr.mxu0 0.0
    %352 = vmatpush1.msra.mxu0 0.0
    %353 = vmatprep.subr.mxu0 0.0
    %354 = vmatpush1.msra.mxu0 0.0
    %355 = vmatprep.subr.mxu0 0.0
    %356 = vmatpush1.msra.mxu0 0.0
    %357 = vmatprep.subr.mxu0 0.0
    %358 = vmatpush1.msra.mxu0 0.0
    %359 = vmatprep.subr.mxu0 0.0
    %360 = vmatpush1.msra.mxu0 0.0
    %361 = vmatprep.subr.mxu0 0.0
    %362 = vmatpush1.msra.mxu0 0.0
    %363 = vmatprep.subr.mxu0 0.0
    %364 = vmatpush1.msra.mxu0 0.0
    %365 = vmatprep.subr.mxu0 0.0
    %366 = vmatpush1.msra.mxu0 0.0
    %367 = vmatprep.subr.mxu0 0.0
    %368 = vmatpush1.msra.mxu0 %v335
    %369 = vmatprep.subr.mxu0 0.0
    %370 = vmatpush2.msra.mxu0 0.0
    %371 = vmatprep.subr.mxu0 0.0
    %372 = vmatpush2.msra.mxu0 0.0
    %373 = vmatprep.subr.mxu0 0.0
    %374 = vmatpush2.msra.mxu0 0.0
    %375 = vmatprep.subr.mxu0 0.0
    %376 = vmatpush2.msra.mxu0 0.0
    %377 = vmatprep.subr.mxu0 0.0
    %378 = vmatpush2.msra.mxu0 0.0
    %379 = vmatprep.subr.mxu0 0.0
    %380 = vmatpush2.msra.mxu0 0.0
    %381 = vmatprep.subr.mxu0 0.0
    %382 = vmatpush2.msra.mxu0 0.0
    %383 = vmatprep.subr.mxu0 0.0
    %384 = vmatpush2.msra.mxu0 0.0
    %385 = vmatprep.subr.mxu0 0.0
    %386 = vmatpush2.msra.mxu0 0.0
    %387 = vmatprep.subr.mxu0 0.0
    %388 = vmatpush2.msra.mxu0 0.0
    %389 = vmatprep.subr.mxu0 0.0
    %390 = vmatpush2.msra.mxu0 0.0
    %391 = vmatprep.subr.mxu0 0.0
    %392 = vmatpush2.msra.mxu0 0.0
    %393 = vmatprep.subr.mxu0 0.0
    %394 = vmatpush2.msra.mxu0 0.0
    %395 = vmatprep.subr.mxu0 0.0
    %396 = vmatpush2.msra.mxu0 0.0
    %397 = vmatprep.subr.mxu0 0.0
    %398 = vmatpush2.msra.mxu0 0.0
    %399 = vmatprep.subr.mxu0 0.0
    %400 = vmatpush2.msra.mxu0 0.0
    %401 = vmatprep.mubr.f32.mxu0 0.0
    %402 = vmatmul.mubr.f32.gmra.mxu0 %v332
    %v403 = vpop.f32.mrf.mxu0
    %v404 = vadd.f32 %v328, %v403
    %v405 = vpop.f32.mrf.mxu0
    %406 = vdwg.mxu0
    %v408 = vrot.slane %v404, 2
    %v410 = vadd.f32 %v404, %v408
    %v411 = vxor.u32 %v410, 2147483648
    %v412 = vmul.f32 %v411, 1.442695
    %v413 = vpow.pop %v412
    %v414 = vadd.f32 %v413, 1.0
    %v415 = vrcp.pop %v414
    %v416 = vmul.f32 1.0, %v415
    %v417 = vlaneseq
    %v418 = vshrl.u32 %v417, 7
    %v419 = vsub.s32 0, %v418
    %v420 = vrot.slane %v416, %v419
    %422 = vbcast.lane.b32.xlu0 %v420, 256
    %v423 = vpop.permute.xlu0 %422
    %s425 = sor.u32 256, 8
    %426 = vbcast.lane.b32.xlu0 %v420, %s425
    %v427 = vpop.permute.xlu0 %426
    %s429 = sor.u32 256, 16
    %430 = vbcast.lane.b32.xlu0 %v420, %s429
    %v431 = vpop.permute.xlu0 %430
    %s433 = sor.u32 256, 24
    %434 = vbcast.lane.b32.xlu0 %v420, %s433
    %v435 = vpop.permute.xlu0 %434
    %v436 = vlaneseq
    %v437 = vshrl.u32 %v436, 7
    %v438 = vsub.s32 1, %v437
    %v439 = vrot.slane %v416, %v438
    %441 = vbcast.lane.b32.xlu0 %v439, 256
    %v442 = vpop.permute.xlu0 %441
    %s444 = sor.u32 256, 8
    %445 = vbcast.lane.b32.xlu0 %v439, %s444
    %v446 = vpop.permute.xlu0 %445
    %s448 = sor.u32 256, 16
    %449 = vbcast.lane.b32.xlu0 %v439, %s448
    %v450 = vpop.permute.xlu0 %449
    %s452 = sor.u32 256, 24
    %453 = vbcast.lane.b32.xlu0 %v439, %s452
    %v454 = vpop.permute.xlu0 %453
    %v455 = vmul.f32 %v55, %v423
    %v456 = vmul.f32 %v56, %v423
    %v457 = vmul.f32 %v57, %v427
    %v458 = vmul.f32 %v58, %v427
    %v459 = vmul.f32 %v59, %v431
    %v460 = vmul.f32 %v60, %v431
    %v461 = vmul.f32 %v61, %v435
    %v462 = vmul.f32 %v62, %v435
    %v463 = vmul.f32 %v63, %v442
    %v464 = vmul.f32 %v64, %v442
    %v465 = vmul.f32 %v65, %v446
    %v466 = vmul.f32 %v66, %v446
    %v467 = vmul.f32 %v67, %v450
    %v468 = vmul.f32 %v68, %v450
    %v469 = vmul.f32 %v69, %v454
    %v470 = vmul.f32 %v70, %v454
    %v471 = vadd.f32 %v455, %v457
    %v472 = vadd.f32 %v471, %v459
    %v473 = vadd.f32 %v472, %v461
    %v474 = vrot.slane %v473, 4
    %v475 = vadd.f32 %v473, %v474
    %v476 = vrot.slane %v475, 2
    %v477 = vadd.f32 %v475, %v476
    %v478 = vrot.slane %v477, 1
    %v479 = vadd.f32 %v477, %v478
    %v480 = vadd.f32 %v456, %v458
    %v481 = vadd.f32 %v480, %v460
    %v482 = vadd.f32 %v481, %v462
    %v483 = vrot.slane %v482, 4
    %v484 = vadd.f32 %v482, %v483
    %v485 = vrot.slane %v484, 2
    %v486 = vadd.f32 %v484, %v485
    %v487 = vrot.slane %v486, 1
    %v488 = vadd.f32 %v486, %v487
    %v489 = vadd.f32 %v463, %v465
    %v490 = vadd.f32 %v489, %v467
    %v491 = vadd.f32 %v490, %v469
    %v492 = vrot.slane %v491, 4
    %v493 = vadd.f32 %v491, %v492
    %v494 = vrot.slane %v493, 2
    %v495 = vadd.f32 %v493, %v494
    %v496 = vrot.slane %v495, 1
    %v497 = vadd.f32 %v495, %v496
    %v498 = vadd.f32 %v464, %v466
    %v499 = vadd.f32 %v498, %v468
    %v500 = vadd.f32 %v499, %v470
    %v501 = vrot.slane %v500, 4
    %v502 = vadd.f32 %v500, %v501
    %v503 = vrot.slane %v502, 2
    %v504 = vadd.f32 %v502, %v503
    %v505 = vrot.slane %v504, 1
    %v506 = vadd.f32 %v504, %v505
    %v507 = vrcp.pop 32.0
    %v508 = vmul.f32 %v479, %v507
    %v509 = vmul.f32 %v488, %v507
    %v510 = vmul.f32 %v497, %v507
    %v511 = vmul.f32 %v506, %v507
    %v512 = vmax.f32 %v455, %v457
    %v513 = vmax.f32 %v512, %v459
    %v514 = vmax.f32 %v513, %v461
    %v515 = vrot.slane %v514, 4
    %v516 = vmax.f32 %v514, %v515
    %v517 = vrot.slane %v516, 2
    %v518 = vmax.f32 %v516, %v517
    %v519 = vrot.slane %v518, 1
    %v520 = vmax.f32 %v518, %v519
    %v521 = vmax.f32 %v456, %v458
    %v522 = vmax.f32 %v521, %v460
    %v523 = vmax.f32 %v522, %v462
    %v524 = vrot.slane %v523, 4
    %v525 = vmax.f32 %v523, %v524
    %v526 = vrot.slane %v525, 2
    %v527 = vmax.f32 %v525, %v526
    %v528 = vrot.slane %v527, 1
    %v529 = vmax.f32 %v527, %v528
    %v530 = vmax.f32 %v463, %v465
    %v531 = vmax.f32 %v530, %v467
    %v532 = vmax.f32 %v531, %v469
    %v533 = vrot.slane %v532, 4
    %v534 = vmax.f32 %v532, %v533
    %v535 = vrot.slane %v534, 2
    %v536 = vmax.f32 %v534, %v535
    %v537 = vrot.slane %v536, 1
    %v538 = vmax.f32 %v536, %v537
    %v539 = vmax.f32 %v464, %v466
    %v540 = vmax.f32 %v539, %v468
    %v541 = vmax.f32 %v540, %v470
    %v542 = vrot.slane %v541, 4
    %v543 = vmax.f32 %v541, %v542
    %v544 = vrot.slane %v543, 2
    %v545 = vmax.f32 %v543, %v544
    %v546 = vrot.slane %v545, 1
    %v547 = vmax.f32 %v545, %v546
    %v552 = vsel %vm182, %v510, %v508
    %v553 = vsel %vm182, %v511, %v509
    %v560 = vsel %vm182, %v538, %v520
    %v561 = vsel %vm182, %v547, %v529
    %v564 = vld [vmem:[#allocation5] sm:$0xff]
    %v565 = vld [vmem:[#allocation5 + $0x8] sm:$0xff]
    %v566 = vld [vmem:[#allocation5 + $0x10] sm:$0xff]
    %v567 = vld [vmem:[#allocation5 + $0x18] sm:$0xff]
    %v568 = vld [vmem:[#allocation5 + $0x20] sm:$0xff]
    %v569 = vld [vmem:[#allocation5 + $0x28] sm:$0xff]
    %v570 = vld [vmem:[#allocation5 + $0x30] sm:$0xff]
    %v571 = vld [vmem:[#allocation5 + $0x38] sm:$0xff]
    %v572 = vld [vmem:[#allocation5 + $0x40] sm:$0xff]
    %v573 = vld [vmem:[#allocation5 + $0x48] sm:$0xff]
    %v574 = vld [vmem:[#allocation5 + $0x50] sm:$0xff]
    %v575 = vld [vmem:[#allocation5 + $0x58] sm:$0xff]
    %v576 = vld [vmem:[#allocation5 + $0x60] sm:$0xff]
    %v577 = vld [vmem:[#allocation5 + $0x68] sm:$0xff]
    %v578 = vld [vmem:[#allocation5 + $0x70] sm:$0xff]
    %v579 = vld [vmem:[#allocation5 + $0x78] sm:$0xff]
    %v580 = vld [vmem:[#allocation5 + $0x80] sm:$0xff]
    %v581 = vld [vmem:[#allocation5 + $0x88] sm:$0xff]
    %v582 = vld [vmem:[#allocation5 + $0x90] sm:$0xff]
    %v583 = vld [vmem:[#allocation5 + $0x98] sm:$0xff]
    %v584 = vld [vmem:[#allocation5 + $0xa0] sm:$0xff]
    %v585 = vld [vmem:[#allocation5 + $0xa8] sm:$0xff]
    %v586 = vld [vmem:[#allocation5 + $0xb0] sm:$0xff]
    %v587 = vld [vmem:[#allocation5 + $0xb8] sm:$0xff]
    %v588 = vld [vmem:[#allocation5 + $0xc0] sm:$0xff]
    %v589 = vld [vmem:[#allocation5 + $0xc8] sm:$0xff]
    %v590 = vld [vmem:[#allocation5 + $0xd0] sm:$0xff]
    %v591 = vld [vmem:[#allocation5 + $0xd8] sm:$0xff]
    %v592 = vld [vmem:[#allocation5 + $0xe0] sm:$0xff]
    %v593 = vld [vmem:[#allocation5 + $0xe8] sm:$0xff]
    %v594 = vld [vmem:[#allocation5 + $0xf0] sm:$0xff]
    %v595 = vld [vmem:[#allocation5 + $0xf8] sm:$0xff]
    %v596 = vld [vmem:[#allocation5 + $0x100] sm:$0xff]
    %v597 = vld [vmem:[#allocation5 + $0x108] sm:$0xff]
    %v598 = vld [vmem:[#allocation5 + $0x110] sm:$0xff]
    %v599 = vld [vmem:[#allocation5 + $0x118] sm:$0xff]
    %v600 = vld [vmem:[#allocation5 + $0x120] sm:$0xff]
    %v601 = vld [vmem:[#allocation5 + $0x128] sm:$0xff]
    %v602 = vld [vmem:[#allocation5 + $0x130] sm:$0xff]
    %v603 = vld [vmem:[#allocation5 + $0x138] sm:$0xff]
    %v604 = vld [vmem:[#allocation5 + $0x140] sm:$0xff]
    %v605 = vld [vmem:[#allocation5 + $0x148] sm:$0xff]
    %v606 = vld [vmem:[#allocation5 + $0x150] sm:$0xff]
    %v607 = vld [vmem:[#allocation5 + $0x158] sm:$0xff]
    %v608 = vld [vmem:[#allocation5 + $0x160] sm:$0xff]
    %v609 = vld [vmem:[#allocation5 + $0x168] sm:$0xff]
    %v610 = vld [vmem:[#allocation5 + $0x170] sm:$0xff]
    %v611 = vld [vmem:[#allocation5 + $0x178] sm:$0xff]
    %v612 = vld [vmem:[#allocation5 + $0x180] sm:$0xff]
    %v613 = vld [vmem:[#allocation5 + $0x188] sm:$0xff]
    %v614 = vld [vmem:[#allocation5 + $0x190] sm:$0xff]
    %v615 = vld [vmem:[#allocation5 + $0x198] sm:$0xff]
    %v616 = vld [vmem:[#allocation5 + $0x1a0] sm:$0xff]
    %v617 = vld [vmem:[#allocation5 + $0x1a8] sm:$0xff]
    %v618 = vld [vmem:[#allocation5 + $0x1b0] sm:$0xff]
    %v619 = vld [vmem:[#allocation5 + $0x1b8] sm:$0xff]
    %v620 = vld [vmem:[#allocation5 + $0x1c0] sm:$0xff]
    %v621 = vld [vmem:[#allocation5 + $0x1c8] sm:$0xff]
    %v622 = vld [vmem:[#allocation5 + $0x1d0] sm:$0xff]
    %v623 = vld [vmem:[#allocation5 + $0x1d8] sm:$0xff]
    %v624 = vld [vmem:[#allocation5 + $0x1e0] sm:$0xff]
    %v625 = vld [vmem:[#allocation5 + $0x1e8] sm:$0xff]
    %v626 = vld [vmem:[#allocation5 + $0x1f0] sm:$0xff]
    %v627 = vld [vmem:[#allocation5 + $0x1f8] sm:$0xff]
    %v628 = vld [vmem:[#allocation5 + $0x200] sm:$0xff]
    %v629 = vld [vmem:[#allocation5 + $0x208] sm:$0xff]
    %v630 = vld [vmem:[#allocation5 + $0x210] sm:$0xff]
    %v631 = vld [vmem:[#allocation5 + $0x218] sm:$0xff]
    %v632 = vld [vmem:[#allocation5 + $0x220] sm:$0xff]
    %v633 = vld [vmem:[#allocation5 + $0x228] sm:$0xff]
    %v634 = vld [vmem:[#allocation5 + $0x230] sm:$0xff]
    %v635 = vld [vmem:[#allocation5 + $0x238] sm:$0xff]
    %v636 = vld [vmem:[#allocation5 + $0x240] sm:$0xff]
    %v637 = vld [vmem:[#allocation5 + $0x248] sm:$0xff]
    %v638 = vld [vmem:[#allocation5 + $0x250] sm:$0xff]
    %v639 = vld [vmem:[#allocation5 + $0x258] sm:$0xff]
    %v640 = vld [vmem:[#allocation5 + $0x260] sm:$0xff]
    %v641 = vld [vmem:[#allocation5 + $0x268] sm:$0xff]
    %v642 = vld [vmem:[#allocation5 + $0x270] sm:$0xff]
    %v643 = vld [vmem:[#allocation5 + $0x278] sm:$0xff]
    %v644 = vld [vmem:[#allocation5 + $0x280] sm:$0xff]
    %v645 = vld [vmem:[#allocation5 + $0x288] sm:$0xff]
    %v646 = vld [vmem:[#allocation5 + $0x290] sm:$0xff]
    %v647 = vld [vmem:[#allocation5 + $0x298] sm:$0xff]
    %v648 = vld [vmem:[#allocation5 + $0x2a0] sm:$0xff]
    %v649 = vld [vmem:[#allocation5 + $0x2a8] sm:$0xff]
    %v650 = vld [vmem:[#allocation5 + $0x2b0] sm:$0xff]
    %v651 = vld [vmem:[#allocation5 + $0x2b8] sm:$0xff]
    %v652 = vld [vmem:[#allocation5 + $0x2c0] sm:$0xff]
    %v653 = vld [vmem:[#allocation5 + $0x2c8] sm:$0xff]
    %v654 = vld [vmem:[#allocation5 + $0x2d0] sm:$0xff]
    %v655 = vld [vmem:[#allocation5 + $0x2d8] sm:$0xff]
    %v656 = vld [vmem:[#allocation5 + $0x2e0] sm:$0xff]
    %v657 = vld [vmem:[#allocation5 + $0x2e8] sm:$0xff]
    %v658 = vld [vmem:[#allocation5 + $0x2f0] sm:$0xff]
    %v659 = vld [vmem:[#allocation5 + $0x2f8] sm:$0xff]
    %v660 = vld [vmem:[#allocation5 + $0x300] sm:$0xff]
    %v661 = vld [vmem:[#allocation5 + $0x308] sm:$0xff]
    %v662 = vld [vmem:[#allocation5 + $0x310] sm:$0xff]
    %v663 = vld [vmem:[#allocation5 + $0x318] sm:$0xff]
    %v664 = vld [vmem:[#allocation5 + $0x320] sm:$0xff]
    %v665 = vld [vmem:[#allocation5 + $0x328] sm:$0xff]
    %v666 = vld [vmem:[#allocation5 + $0x330] sm:$0xff]
    %v667 = vld [vmem:[#allocation5 + $0x338] sm:$0xff]
    %v668 = vld [vmem:[#allocation5 + $0x340] sm:$0xff]
    %v669 = vld [vmem:[#allocation5 + $0x348] sm:$0xff]
    %v670 = vld [vmem:[#allocation5 + $0x350] sm:$0xff]
    %v671 = vld [vmem:[#allocation5 + $0x358] sm:$0xff]
    %v672 = vld [vmem:[#allocation5 + $0x360] sm:$0xff]
    %v673 = vld [vmem:[#allocation5 + $0x368] sm:$0xff]
    %v674 = vld [vmem:[#allocation5 + $0x370] sm:$0xff]
    %v675 = vld [vmem:[#allocation5 + $0x378] sm:$0xff]
    %v676 = vld [vmem:[#allocation5 + $0x380] sm:$0xff]
    %v677 = vld [vmem:[#allocation5 + $0x388] sm:$0xff]
    %v678 = vld [vmem:[#allocation5 + $0x390] sm:$0xff]
    %v679 = vld [vmem:[#allocation5 + $0x398] sm:$0xff]
    %v680 = vld [vmem:[#allocation5 + $0x3a0] sm:$0xff]
    %v681 = vld [vmem:[#allocation5 + $0x3a8] sm:$0xff]
    %v682 = vld [vmem:[#allocation5 + $0x3b0] sm:$0xff]
    %v683 = vld [vmem:[#allocation5 + $0x3b8] sm:$0xff]
    %v684 = vld [vmem:[#allocation5 + $0x3c0] sm:$0xff]
    %v685 = vld [vmem:[#allocation5 + $0x3c8] sm:$0xff]
    %v686 = vld [vmem:[#allocation5 + $0x3d0] sm:$0xff]
    %v687 = vld [vmem:[#allocation5 + $0x3d8] sm:$0xff]
    %v688 = vld [vmem:[#allocation5 + $0x3e0] sm:$0xff]
    %v689 = vld [vmem:[#allocation5 + $0x3e8] sm:$0xff]
    %v690 = vld [vmem:[#allocation5 + $0x3f0] sm:$0xff]
    %v691 = vld [vmem:[#allocation5 + $0x3f8] sm:$0xff]
    %v692 = vld [vmem:[%s6] sm:$0x3]
    %v694 = vlaneseq
    %v695 = vshrl.u32 %v694, 7
    %v696 = vsub.s32 0, %v695
    %v697 = vrot.slane %v692, %v696
    %v698 = vlaneseq
    %v699 = vshrl.u32 %v698, 7
    %v700 = vsub.s32 1, %v699
    %v701 = vrot.slane %v692, %v700
    %704 = vmatprep.subr.mxu0 %v595
    %705 = vmatpush1.msra.mxu0 %v594
    %706 = vmatprep.subr.mxu0 %v593
    %707 = vmatpush1.msra.mxu0 %v592
    %708 = vmatprep.subr.mxu0 %v591
    %709 = vmatpush1.msra.mxu0 %v590
    %710 = vmatprep.subr.mxu0 %v589
    %711 = vmatpush1.msra.mxu0 %v588
    %712 = vmatprep.subr.mxu0 %v587
    %713 = vmatpush1.msra.mxu0 %v586
    %714 = vmatprep.subr.mxu0 %v585
    %715 = vmatpush1.msra.mxu0 %v584
    %716 = vmatprep.subr.mxu0 %v583
    %717 = vmatpush1.msra.mxu0 %v582
    %718 = vmatprep.subr.mxu0 %v581
    %719 = vmatpush1.msra.mxu0 %v580
    %720 = vmatprep.subr.mxu0 %v579
    %721 = vmatpush1.msra.mxu0 %v578
    %722 = vmatprep.subr.mxu0 %v577
    %723 = vmatpush1.msra.mxu0 %v576
    %724 = vmatprep.subr.mxu0 %v575
    %725 = vmatpush1.msra.mxu0 %v574
    %726 = vmatprep.subr.mxu0 %v573
    %727 = vmatpush1.msra.mxu0 %v572
    %728 = vmatprep.subr.mxu0 %v571
    %729 = vmatpush1.msra.mxu0 %v570
    %730 = vmatprep.subr.mxu0 %v569
    %731 = vmatpush1.msra.mxu0 %v568
    %732 = vmatprep.subr.mxu0 %v567
    %733 = vmatpush1.msra.mxu0 %v566
    %734 = vmatprep.subr.mxu0 %v565
    %735 = vmatpush1.msra.mxu0 %v564
    %736 = vmatprep.subr.mxu0 %v627
    %737 = vmatpush2.msra.mxu0 %v626
    %738 = vmatprep.subr.mxu0 %v625
    %739 = vmatpush2.msra.mxu0 %v624
    %740 = vmatprep.subr.mxu0 %v623
    %741 = vmatpush2.msra.mxu0 %v622
    %742 = vmatprep.subr.mxu0 %v621
    %743 = vmatpush2.msra.mxu0 %v620
    %744 = vmatprep.subr.mxu0 %v619
    %745 = vmatpush2.msra.mxu0 %v618
    %746 = vmatprep.subr.mxu0 %v617
    %747 = vmatpush2.msra.mxu0 %v616
    %748 = vmatprep.subr.mxu0 %v615
    %749 = vmatpush2.msra.mxu0 %v614
    %750 = vmatprep.subr.mxu0 %v613
    %751 = vmatpush2.msra.mxu0 %v612
    %752 = vmatprep.subr.mxu0 %v611
    %753 = vmatpush2.msra.mxu0 %v610
    %754 = vmatprep.subr.mxu0 %v609
    %755 = vmatpush2.msra.mxu0 %v608
    %756 = vmatprep.subr.mxu0 %v607
    %757 = vmatpush2.msra.mxu0 %v606
    %758 = vmatprep.subr.mxu0 %v605
    %759 = vmatpush2.msra.mxu0 %v604
    %760 = vmatprep.subr.mxu0 %v603
    %761 = vmatpush2.msra.mxu0 %v602
    %762 = vmatprep.subr.mxu0 %v601
    %763 = vmatpush2.msra.mxu0 %v600
    %764 = vmatprep.subr.mxu0 %v599
    %765 = vmatpush2.msra.mxu0 %v598
    %766 = vmatprep.subr.mxu0 %v597
    %767 = vmatpush2.msra.mxu0 %v596
    %768 = vmatprep.mubr.f32.mxu0 %v553
    %769 = vmatmul.mubr.f32.gmra.mxu0 %v552
    %v770 = vpop.f32.mrf.mxu0
    %v771 = vadd.f32 %v697, %v770
    %v772 = vpop.f32.mrf.mxu0
    %v773 = vadd.f32 %v701, %v772
    %774 = vdwg.mxu0
    %775 = vmatprep.subr.mxu0 %v659
    %776 = vmatpush1.msra.mxu0 %v658
    %777 = vmatprep.subr.mxu0 %v657
    %778 = vmatpush1.msra.mxu0 %v656
    %779 = vmatprep.subr.mxu0 %v655
    %780 = vmatpush1.msra.mxu0 %v654
    %781 = vmatprep.subr.mxu0 %v653
    %782 = vmatpush1.msra.mxu0 %v652
    %783 = vmatprep.subr.mxu0 %v651
    %784 = vmatpush1.msra.mxu0 %v650
    %785 = vmatprep.subr.mxu0 %v649
    %786 = vmatpush1.msra.mxu0 %v648
    %787 = vmatprep.subr.mxu0 %v647
    %788 = vmatpush1.msra.mxu0 %v646
    %789 = vmatprep.subr.mxu0 %v645
    %790 = vmatpush1.msra.mxu0 %v644
    %791 = vmatprep.subr.mxu0 %v643
    %792 = vmatpush1.msra.mxu0 %v642
    %793 = vmatprep.subr.mxu0 %v641
    %794 = vmatpush1.msra.mxu0 %v640
    %795 = vmatprep.subr.mxu0 %v639
    %796 = vmatpush1.msra.mxu0 %v638
    %797 = vmatprep.subr.mxu0 %v637
    %798 = vmatpush1.msra.mxu0 %v636
    %799 = vmatprep.subr.mxu0 %v635
    %800 = vmatpush1.msra.mxu0 %v634
    %801 = vmatprep.subr.mxu0 %v633
    %802 = vmatpush1.msra.mxu0 %v632
    %803 = vmatprep.subr.mxu0 %v631
    %804 = vmatpush1.msra.mxu0 %v630
    %805 = vmatprep.subr.mxu0 %v629
    %806 = vmatpush1.msra.mxu0 %v628
    %807 = vmatprep.subr.mxu0 %v691
    %808 = vmatpush2.msra.mxu0 %v690
    %809 = vmatprep.subr.mxu0 %v689
    %810 = vmatpush2.msra.mxu0 %v688
    %811 = vmatprep.subr.mxu0 %v687
    %812 = vmatpush2.msra.mxu0 %v686
    %813 = vmatprep.subr.mxu0 %v685
    %814 = vmatpush2.msra.mxu0 %v684
    %815 = vmatprep.subr.mxu0 %v683
    %816 = vmatpush2.msra.mxu0 %v682
    %817 = vmatprep.subr.mxu0 %v681
    %818 = vmatpush2.msra.mxu0 %v680
    %819 = vmatprep.subr.mxu0 %v679
    %820 = vmatpush2.msra.mxu0 %v678
    %821 = vmatprep.subr.mxu0 %v677
    %822 = vmatpush2.msra.mxu0 %v676
    %823 = vmatprep.subr.mxu0 %v675
    %824 = vmatpush2.msra.mxu0 %v674
    %825 = vmatprep.subr.mxu0 %v673
    %826 = vmatpush2.msra.mxu0 %v672
    %827 = vmatprep.subr.mxu0 %v671
    %828 = vmatpush2.msra.mxu0 %v670
    %829 = vmatprep.subr.mxu0 %v669
    %830 = vmatpush2.msra.mxu0 %v668
    %831 = vmatprep.subr.mxu0 %v667
    %832 = vmatpush2.msra.mxu0 %v666
    %833 = vmatprep.subr.mxu0 %v665
    %834 = vmatpush2.msra.mxu0 %v664
    %835 = vmatprep.subr.mxu0 %v663
    %836 = vmatpush2.msra.mxu0 %v662
    %837 = vmatprep.subr.mxu0 %v661
    %838 = vmatpush2.msra.mxu0 %v660
    %839 = vmatprep.mubr.f32.mxu0 %v561
    %840 = vmatmul.mubr.f32.gmra.mxu0 %v560
    %v841 = vpop.f32.mrf.mxu0
    %v842 = vadd.f32 %v771, %v841
    %v843 = vpop.f32.mrf.mxu0
    %v844 = vadd.f32 %v773, %v843
    %845 = vdwg.mxu0
    %v846 = vxor.u32 %v842, 2147483648
    %v847 = vxor.u32 %v844, 2147483648
    %v848 = vmul.f32 %v846, 1.442695
    %v849 = vpow.pop %v848
    %v850 = vmul.f32 %v847, 1.442695
    %v851 = vpow.pop %v850
    %v852 = vadd.f32 %v849, 1.0
    %v853 = vadd.f32 %v851, 1.0
    %v854 = vrcp.pop %v852
    %v855 = vmul.f32 1.0, %v854
    %v856 = vrcp.pop %v853
    %v857 = vmul.f32 1.0, %v856
    %v860 = vcombine.low %v855, %v857
    %v862 = vunpack.c.l.s4 1966171168
    %v863 = vunpack.c.0.s8 %v862
    %v864 = vlaneseq
    %v865 = vshrl.u32 %v864, 7
    %v866 = vsub.s32 %v863, %v865
    %v867 = vrot.slane %v860, %v866
    %v868 = vcombine.high %v867, %v867
    %v870 = vunpack.c.l.s4 1966171168
    %v871 = vunpack.c.0.s8 %v870
    %v872 = vlaneseq
    %v873 = vshrl.u32 %v872, 7
    %v874 = vsub.s32 %v871, %v873
    %v875 = vrot.slane %v867, %v874
    %v877 = vunpack.c.l.s4 1966171168
    %v878 = vunpack.c.0.s8 %v877
    %v879 = vlaneseq
    %v880 = vshrl.u32 %v879, 7
    %v881 = vsub.s32 %v878, %v880
    %v882 = vrot.slane %v868, %v881
    %v883 = vlaneseq
    %v884 = vshrl.u32 %v883, 7
    %v885 = vsub.s32 0, %v884
    %v886 = vrot.slane %v875, %v885
    %v887 = vlaneseq
    %v888 = vshrl.u32 %v887, 7
    %v889 = vsub.s32 1, %v888
    %v890 = vrot.slane %v875, %v889
    %v891 = vlaneseq
    %v892 = vshrl.u32 %v891, 7
    %v893 = vsub.s32 0, %v892
    %v894 = vrot.slane %v882, %v893
    %v895 = vlaneseq
    %v896 = vshrl.u32 %v895, 7
    %v897 = vsub.s32 1, %v896
    %v898 = vrot.slane %v882, %v897
    %v903 = vmul.f32 %v455, %v886
    %v904 = vmul.f32 %v456, %v890
    %v905 = vmul.f32 %v457, %v886
    %v906 = vmul.f32 %v458, %v890
    %v907 = vmul.f32 %v459, %v886
    %v908 = vmul.f32 %v460, %v890
    %v909 = vmul.f32 %v461, %v886
    %v910 = vmul.f32 %v462, %v890
    %v911 = vmul.f32 %v463, %v894
    %v912 = vmul.f32 %v464, %v898
    %v913 = vmul.f32 %v465, %v894
    %v914 = vmul.f32 %v466, %v898
    %v915 = vmul.f32 %v467, %v894
    %v916 = vmul.f32 %v468, %v898
    %v917 = vmul.f32 %v469, %v894
    %v918 = vmul.f32 %v470, %v898
    %919 = vst [vmem:[#allocation7] sm:$0xff] %v903
    %920 = vst [vmem:[#allocation7 + $0x8] sm:$0xff] %v904
    %921 = vst [vmem:[#allocation7 + $0x10] sm:$0xff] %v905
    %922 = vst [vmem:[#allocation7 + $0x18] sm:$0xff] %v906
    %923 = vst [vmem:[#allocation7 + $0x20] sm:$0xff] %v907
    %924 = vst [vmem:[#allocation7 + $0x28] sm:$0xff] %v908
    %925 = vst [vmem:[#allocation7 + $0x30] sm:$0xff] %v909
    %926 = vst [vmem:[#allocation7 + $0x38] sm:$0xff] %v910
    %927 = vst [vmem:[#allocation7 + $0x40] sm:$0xff] %v911
    %928 = vst [vmem:[#allocation7 + $0x48] sm:$0xff] %v912
    %929 = vst [vmem:[#allocation7 + $0x50] sm:$0xff] %v913
    %930 = vst [vmem:[#allocation7 + $0x58] sm:$0xff] %v914
    %931 = vst [vmem:[#allocation7 + $0x60] sm:$0xff] %v915
    %932 = vst [vmem:[#allocation7 + $0x68] sm:$0xff] %v916
    %933 = vst [vmem:[#allocation7 + $0x70] sm:$0xff] %v917
    %934 = vst [vmem:[#allocation7 + $0x78] sm:$0xff] %v918
    // Predicated region
    $region38: #{tpu_custom_call.1} parent=1 // pred_check
      _
    $region39: #{tpu_custom_call.1} parent=1 // pred_check_branch
      %936 = sbr.rel (0) target = $region41
    $region40: #{tpu_custom_call.1} parent=1 // pred_region
      %s938 = ssub.s32 2048, 2048
      %939 = vsyncadd [#allocation4], %s938
      %s940 = sshll.u32 [#allocation7], 4
      %s941 = int_to_ptr.vmem [resolvable:$true] %s940
      %946 = dma.vmem_to_hbm [thread:$0]  %s941, 2048, %s7, [#allocation4], 256, 256, 16
    $region41: #{tpu_custom_call.1} parent=1 // pred_fallthru
      _
    // Predicated region
    $region42: #{tpu_custom_call.1} parent=1 // pred_check
      _
    $region43: #{tpu_custom_call.1} parent=1 // pred_check_branch
      %948 = sbr.rel (0) target = $region45
    $region44: #{tpu_custom_call.1} parent=1 // pred_region
      %949 = dma.done [#allocation4], 2048
    $region45: #{tpu_custom_call.1} parent=1 // pred_fallthru
      _
    %950 = vsyncpa [#allocation3], 1
    %951 = vsyncpa [#allocation6], 1
    %952 = vsyncpa [#allocation4], 1

</llo_original>
